<compile_context>
chip_gen: v7x
topology: tpu7x:2x2x1
jax: 0.10.0
libtpu: 0.0.40
codegen_flags: <defaults>
</compile_context>

<pallas_src>
import functools
import math

import jax
import jax.numpy as jnp
from jax import lax
from jax.experimental import pallas as pl
from jax.experimental.pallas import tpu as pltpu


_LRELU_SLOPE = 0.2
_IN_EPS = 1e-5            # nn.InstanceNorm2d default
_INV_SQRT2 = 1.0 / math.sqrt(2.0)


# ---------------------------------------------------------------------------
# tiling helpers
# ---------------------------------------------------------------------------
def _pick_row_tile(rows, lanes, itemsize=4, max_block_bytes=2 << 20):
    """Largest multiple-of-8 divisor of `rows` whose (tile, lanes) f32 block
    stays under `max_block_bytes`. Falls back to full extent (always legal)."""
    if rows % 8 != 0:
        return rows
    cap = max(8, max_block_bytes // max(1, lanes * itemsize))
    best = 8
    for t in range(8, min(rows, 1024) + 1, 8):
        if rows % t == 0 and t <= cap:
            best = t
    return best


def _pick_lane_tile(lanes, max_lanes=2048):
    """Lane tile: full extent if small, else the largest 128-multiple divisor."""
    if lanes <= max_lanes or lanes % 128 != 0:
        return lanes
    best = 128
    for t in range(128, max_lanes + 1, 128):
        if lanes % t == 0:
            best = t
    return best


# ---------------------------------------------------------------------------
# kernels
# ---------------------------------------------------------------------------
def _inorm_lrelu_kernel(x_ref, g_ref, b_ref, o_ref, *, eps, slope):
    # x_ref: (TR, HW)   one row per (n, c) instance; reduction runs along lanes
    # g_ref/b_ref: (TR, 1)  per-row affine (InstanceNorm2d weight/bias)
    x = x_ref[...].astype(jnp.float32)
    inv_hw = 1.0 / x.shape[1]
    mean = jnp.sum(x, axis=1, keepdims=True) * inv_hw
    ex2 = jnp.sum(x * x, axis=1, keepdims=True) * inv_hw
    var = ex2 - mean * mean                       # biased var, f32 accumulation
    scale = g_ref[...].astype(jnp.float32) * lax.rsqrt(var + eps)   # (TR, 1)
    shift = b_ref[...].astype(jnp.float32) - mean * scale           # (TR, 1)
    y = x * scale + shift                         # single fused affine pass
    y = jnp.where(y >= 0.0, y, slope * y)         # fused LeakyReLU
    o_ref[...] = y.astype(o_ref.dtype)


def _lrelu_kernel(x_ref, o_ref, *, slope):
    x = x_ref[...]
    o_ref[...] = jnp.where(x >= 0.0, x, slope * x).astype(o_ref.dtype)


def _conv_mm_kernel(w_ref, p_ref, b_ref, o_ref):
    # w_ref: (Cout, K), p_ref: (1, K, T), b_ref: (Cout, 1), o_ref: (1, Cout, T)
    acc = jnp.dot(w_ref[...], p_ref[0], preferred_element_type=jnp.float32)
    o_ref[0] = (acc + b_ref[...]).astype(o_ref.dtype)


def _conv_mm_res_kernel(w_ref, p_ref, b_ref, r_ref, o_ref, *, scale):
    # Same as above plus fused residual add and final 1/sqrt(2) scaling.
    acc = jnp.dot(w_ref[...], p_ref[0], preferred_element_type=jnp.float32)
    acc = acc + b_ref[...] + r_ref[0].astype(jnp.float32)
    o_ref[0] = (acc * scale).astype(o_ref.dtype)


# ---------------------------------------------------------------------------
# pallas_call wrappers
# ---------------------------------------------------------------------------
def instnorm_lrelu(x_rows, gamma_rows, beta_rows, *, eps=_IN_EPS,
                   slope=_LRELU_SLOPE):
    """x_rows: (N*C, H*W); gamma/beta_rows: (N*C, 1)."""
    R, HW = x_rows.shape
    TR = _pick_row_tile(R, HW, x_rows.dtype.itemsize)
    return pl.pallas_call(
        functools.partial(_inorm_lrelu_kernel, eps=eps, slope=slope),
        out_shape=jax.ShapeDtypeStruct((R, HW), x_rows.dtype),
        grid_spec=pltpu.PrefetchScalarGridSpec(
            num_scalar_prefetch=0,
            grid=(R // TR,),
            in_specs=[
                pl.BlockSpec((TR, HW), lambda i: (i, 0)),
                pl.BlockSpec((TR, 1), lambda i: (i, 0)),
                pl.BlockSpec((TR, 1), lambda i: (i, 0)),
            ],
            out_specs=pl.BlockSpec((TR, HW), lambda i: (i, 0)),
        ),
        compiler_params=pltpu.CompilerParams(
            dimension_semantics=("parallel",)),
    )(x_rows, gamma_rows, beta_rows)


def leaky_relu_rows(x_rows, *, slope=_LRELU_SLOPE):
    """x_rows: (rows, lanes) — standalone LeakyReLU (normalize=False path)."""
    R, HW = x_rows.shape
    TR = _pick_row_tile(R, HW, x_rows.dtype.itemsize)
    return pl.pallas_call(
        functools.partial(_lrelu_kernel, slope=slope),
        out_shape=jax.ShapeDtypeStruct((R, HW), x_rows.dtype),
        grid_spec=pltpu.PrefetchScalarGridSpec(
            num_scalar_prefetch=0,
            grid=(R // TR,),
            in_specs=[pl.BlockSpec((TR, HW), lambda i: (i, 0))],
            out_specs=pl.BlockSpec((TR, HW), lambda i: (i, 0)),
        ),
        compiler_params=pltpu.CompilerParams(
            dimension_semantics=("parallel",)),
    )(x_rows)


def conv_as_matmul(w_mat, patches, bias, residual=None, scale=1.0):
    """Per-batch matmul: out[n] = w_mat @ patches[n] (+ bias) [+ residual, *scale].

    w_mat:    (Cout, K)
    patches:  (N, K, HW)
    bias:     (Cout, 1)
    residual: optional (N, Cout, HW) fused into the epilogue together with
              the final scaling.
    returns   (N, Cout, HW)
    """
    Cout, K = w_mat.shape
    N, _, HW = patches.shape
    T = _pick_lane_tile(HW)
    grid = (N, HW // T)

    in_specs = [
        pl.BlockSpec((Cout, K), lambda n, j: (0, 0)),     # weights (resident)
        pl.BlockSpec((1, K, T), lambda n, j: (n, 0, j)),  # im2col patches
        pl.BlockSpec((Cout, 1), lambda n, j: (0, 0)),     # bias
    ]
    args = [w_mat, patches, bias]
    if residual is None:
        kernel = _conv_mm_kernel
    else:
        kernel = functools.partial(_conv_mm_res_kernel, scale=scale)
        in_specs.append(pl.BlockSpec((1, Cout, T), lambda n, j: (n, 0, j)))
        args.append(residual)

    return pl.pallas_call(
        kernel,
        out_shape=jax.ShapeDtypeStruct((N, Cout, HW), patches.dtype),
        grid_spec=pltpu.PrefetchScalarGridSpec(
            num_scalar_prefetch=0,
            grid=grid,
            in_specs=in_specs,
            out_specs=pl.BlockSpec((1, Cout, T), lambda n, j: (n, 0, j)),
        ),
        compiler_params=pltpu.CompilerParams(
            dimension_semantics=("parallel", "parallel")),
    )(*args)


# ---------------------------------------------------------------------------
# wrapper glue (layout only)
# ---------------------------------------------------------------------------
def _extract_patches_3x3(x):
    """x: (N, C, H, W) -> im2col patches (N, 9*C, H*W), K ordered (dy, dx, c)."""
    N, C, H, W = x.shape
    xp = jnp.pad(x, ((0, 0), (0, 0), (1, 1), (1, 1)))
    slices = []
    for dy in range(3):
        for dx in range(3):
            slices.append(xp[:, :, dy:dy + H, dx:dx + W])
    return jnp.concatenate(slices, axis=1).reshape(N, 9 * C, H * W)


def _w3x3_to_mat(w):
    """(Cout, Cin, 3, 3) -> (Cout, 9*Cin) with K ordered (dy, dx, cin)."""
    cout = w.shape[0]
    return jnp.transpose(w, (0, 2, 3, 1)).reshape(cout, -1)


def _avg_pool2(x):
    # TODO(synk): avg_pool2d(2) kept as an XLA reshape+mean (layout/reduce only).
    N, C, H, W = x.shape
    return x.reshape(N, C, H // 2, 2, W // 2, 2).mean(axis=(3, 5))


def _tile_rows(v, n):
    """(C,) per-channel param -> (n*C, 1) per-(n,c) row param."""
    return jnp.tile(v, n).reshape(-1, 1)


# ---------------------------------------------------------------------------
# ResBlk forward
# ---------------------------------------------------------------------------
def resblk_forward(x, params, *, normalize, downsample):
    """Matches ResBlk.forward: (shortcut(x) + residual(x)) / sqrt(2)."""
    N, Cin, H, W = x.shape
    Cout = params["conv2_w"].shape[0]
    learned_sc = Cin != Cout

    # ---- shortcut branch ----
    if learned_sc:
        sc = conv_as_matmul(
            params["sc_w"].reshape(Cout, Cin),
            x.reshape(N, Cin, H * W),
            jnp.zeros((Cout, 1), x.dtype),
        ).reshape(N, Cout, H, W)
    else:
        sc = x
    if downsample:
        sc = _avg_pool2(sc)

    # ---- residual branch ----
    h = x
    if normalize:
        h = instnorm_lrelu(
            h.reshape(N * Cin, H * W),
            _tile_rows(params["norm1_w"], N),
            _tile_rows(params["norm1_b"], N),
        ).reshape(N, Cin, H, W)
    else:
        h = leaky_relu_rows(h.reshape(N * Cin, H * W)).reshape(N, Cin, H, W)

    # conv1: dim_in -> dim_in, 3x3, pad 1
    h = conv_as_matmul(
        _w3x3_to_mat(params["conv1_w"]),
        _extract_patches_3x3(h),
        params["conv1_b"].reshape(Cin, 1),
    ).reshape(N, Cin, H, W)

    if downsample:
        h = _avg_pool2(h)
    Hr, Wr = h.shape[2], h.shape[3]

    if normalize:
        h = instnorm_lrelu(
            h.reshape(N * Cin, Hr * Wr),
            _tile_rows(params["norm2_w"], N),
            _tile_rows(params["norm2_b"], N),
        ).reshape(N, Cin, Hr, Wr)
    else:
        h = leaky_relu_rows(h.reshape(N * Cin, Hr * Wr)).reshape(N, Cin, Hr, Wr)

    # conv2: dim_in -> dim_out, 3x3, pad 1; fused shortcut add + 1/sqrt(2)
    out = conv_as_matmul(
        _w3x3_to_mat(params["conv2_w"]),
        _extract_patches_3x3(h),
        params["conv2_b"].reshape(Cout, 1),
        residual=sc.reshape(N, Cout, Hr * Wr),
        scale=_INV_SQRT2,
    )
    return out.reshape(N, Cout, Hr, Wr)


# ---------------------------------------------------------------------------
# pure-JAX reference (mirrors the PyTorch module)
# ---------------------------------------------------------------------------
def resblk_ref(x, params, *, normalize, downsample):
    def lrelu(v):
        return jnp.where(v >= 0.0, v, _LRELU_SLOPE * v)

    def inorm(v, w, b):
        m = v.mean(axis=(2, 3), keepdims=True)
        var = ((v - m) ** 2).mean(axis=(2, 3), keepdims=True)
        vhat = (v - m) / jnp.sqrt(var + _IN_EPS)
        return vhat * w.reshape(1, -1, 1, 1) + b.reshape(1, -1, 1, 1)

    def conv(v, w, b=None, pad=1):
        y = lax.conv_general_dilated(
            v, w, window_strides=(1, 1), padding=((pad, pad), (pad, pad)),
            dimension_numbers=("NCHW", "OIHW", "NCHW"),
            precision=lax.Precision.HIGHEST)
        if b is not None:
            y = y + b.reshape(1, -1, 1, 1)
        return y

    def pool(v):
        n, c, hh, ww = v.shape
        return v.reshape(n, c, hh // 2, 2, ww // 2, 2).mean(axis=(3, 5))

    Cin = x.shape[1]
    Cout = params["conv2_w"].shape[0]

    sc = x
    if Cin != Cout:
        sc = conv(sc, params["sc_w"], None, pad=0)
    if downsample:
        sc = pool(sc)

    h = x
    if normalize:
        h = inorm(h, params["norm1_w"], params["norm1_b"])
    h = lrelu(h)
    h = conv(h, params["conv1_w"], params["conv1_b"], pad=1)
    if downsample:
        h = pool(h)
    if normalize:
        h = inorm(h, params["norm2_w"], params["norm2_b"])
    h = lrelu(h)
    h = conv(h, params["conv2_w"], params["conv2_b"], pad=1)
    return (sc + h) * _INV_SQRT2


# ---------------------------------------------------------------------------
# test
# ---------------------------------------------------------------------------
def _init_params(key, cin, cout):
    ks = jax.random.split(key, 9)

    def u(k, shape, fan_in):
        bound = 1.0 / math.sqrt(fan_in)
        return jax.random.uniform(k, shape, minval=-bound, maxval=bound,
                                  dtype=jnp.float32)

    p = {
        "conv1_w": u(ks[0], (cin, cin, 3, 3), cin * 9),
        "conv1_b": u(ks[1], (cin,), cin * 9),
        "conv2_w": u(ks[2], (cout, cin, 3, 3), cin * 9),
        "conv2_b": u(ks[3], (cout,), cin * 9),
        "norm1_w": 1.0 + 0.1 * jax.random.normal(ks[4], (cin,), jnp.float32),
        "norm1_b": 0.1 * jax.random.normal(ks[5], (cin,), jnp.float32),
        "norm2_w": 1.0 + 0.1 * jax.random.normal(ks[6], (cin,), jnp.float32),
        "norm2_b": 0.1 * jax.random.normal(ks[7], (cin,), jnp.float32),
    }
    if cin != cout:
        p["sc_w"] = u(ks[8], (cout, cin, 1, 1), cin)
    return p


if __name__ == "__main__":
    key = jax.random.PRNGKey(0)
    kx1, kx2, kp1, kp2 = jax.random.split(key, 4)

    # Config A: all branches exercised (normalize + downsample + learned shortcut)
    N, Cin, Cout, H, W = 2, 4, 8, 16, 16
    x_a = jax.random.normal(kx1, (N, Cin, H, W), dtype=jnp.float32)
    params_a = _init_params(kp1, Cin, Cout)
    fwd_a = jax.jit(functools.partial(resblk_forward, normalize=True,
                                      downsample=True))
    out_a = jax.block_until_ready(fwd_a(x_a, params_a))
    ref_a = resblk_ref(x_a, params_a, normalize=True, downsample=True)
    assert out_a.shape == (N, Cout, H // 2, W // 2)
    err_a = float(jnp.max(jnp.abs(out_a - ref_a)))
    assert err_a < 5e-3, f"config A mismatch vs reference: {err_a}"

    # Config B: module defaults (no normalize, no downsample, identity shortcut)
    x_b = jax.random.normal(kx2, (N, Cin, H, W), dtype=jnp.float32)
    params_b = _init_params(kp2, Cin, Cin)
    fwd_b = jax.jit(functools.partial(resblk_forward, normalize=False,
                                      downsample=False))
    out_b = jax.block_until_ready(fwd_b(x_b, params_b))
    ref_b = resblk_ref(x_b, params_b, normalize=False, downsample=False)
    assert out_b.shape == (N, Cin, H, W)
    err_b = float(jnp.max(jnp.abs(out_b - ref_b)))
    assert err_b < 5e-3, f"config B mismatch vs reference: {err_b}"

    print("KERNEL_OK")
</pallas_src>

<mosaic_0001>
module attributes {stable_mosaic.version = 11 : i64} {
  func.func @_inorm_lrelu_kernel(%arg0: i32, %arg1: memref<8x256xf32, #tpu.memory_space<vmem>>, %arg2: memref<8x1xf32, #tpu.memory_space<vmem>>, %arg3: memref<8x1xf32, #tpu.memory_space<vmem>>, %arg4: memref<8x256xf32, #tpu.memory_space<vmem>>) attributes {dimension_semantics = [#tpu.dimension_semantics<parallel>], iteration_bounds = array<i64: 1>, scalar_prefetch = 0 : i64, scratch_operands = 0 : i64, tpu.core_type = #tpu.core_type<tc>, window_params = [{transform_indices = @transform_0, window_bounds = array<i64: 8, 256>}, {transform_indices = @transform_1, window_bounds = array<i64: 8, 1>}, {transform_indices = @transform_2, window_bounds = array<i64: 8, 1>}, {transform_indices = @transform_3, window_bounds = array<i64: 8, 256>}]} {
    %c0 = arith.constant 0 : index
    %c0_0 = arith.constant 0 : index
    %0 = vector.load %arg1[%c0, %c0_0] : memref<8x256xf32, #tpu.memory_space<vmem>>, vector<8x256xf32>
    %cst = arith.constant dense<0.000000e+00> : vector<8xf32>
    %1 = vector.multi_reduction <add>, %0, %cst [1] : vector<8x256xf32> to vector<8xf32>
    %2 = vector.shape_cast %1 : vector<8xf32> to vector<8x1xf32>
    %cst_1 = arith.constant 3.906250e-03 : f32
    %3 = vector.broadcast %cst_1 : f32 to vector<8x1xf32>
    %4 = arith.mulf %2, %3 : vector<8x1xf32>
    %5 = arith.mulf %0, %0 : vector<8x256xf32>
    %cst_2 = arith.constant dense<0.000000e+00> : vector<8xf32>
    %6 = vector.multi_reduction <add>, %5, %cst_2 [1] : vector<8x256xf32> to vector<8xf32>
    %7 = vector.shape_cast %6 : vector<8xf32> to vector<8x1xf32>
    %cst_3 = arith.constant 3.906250e-03 : f32
    %8 = vector.broadcast %cst_3 : f32 to vector<8x1xf32>
    %9 = arith.mulf %7, %8 : vector<8x1xf32>
    %10 = arith.mulf %4, %4 : vector<8x1xf32>
    %11 = arith.subf %9, %10 : vector<8x1xf32>
    %c0_4 = arith.constant 0 : index
    %c0_5 = arith.constant 0 : index
    %12 = vector.load %arg2[%c0_4, %c0_5] : memref<8x1xf32, #tpu.memory_space<vmem>>, vector<8x1xf32>
    %cst_6 = arith.constant 9.99999974E-6 : f32
    %13 = vector.broadcast %cst_6 : f32 to vector<8x1xf32>
    %14 = arith.addf %11, %13 : vector<8x1xf32>
    %15 = math.rsqrt %14 : vector<8x1xf32>
    %16 = arith.mulf %12, %15 : vector<8x1xf32>
    %c0_7 = arith.constant 0 : index
    %c0_8 = arith.constant 0 : index
    %17 = vector.load %arg3[%c0_7, %c0_8] : memref<8x1xf32, #tpu.memory_space<vmem>>, vector<8x1xf32>
    %18 = arith.mulf %4, %16 : vector<8x1xf32>
    %19 = arith.subf %17, %18 : vector<8x1xf32>
    %20 = vector.broadcast %16 : vector<8x1xf32> to vector<8x256xf32>
    %21 = arith.mulf %0, %20 : vector<8x256xf32>
    %22 = vector.broadcast %19 : vector<8x1xf32> to vector<8x256xf32>
    %23 = arith.addf %21, %22 : vector<8x256xf32>
    %cst_9 = arith.constant 0.000000e+00 : f32
    %24 = vector.broadcast %cst_9 : f32 to vector<8x256xf32>
    %25 = arith.cmpf oge, %23, %24 : vector<8x256xf32>
    %cst_10 = arith.constant 2.000000e-01 : f32
    %26 = vector.broadcast %cst_10 : f32 to vector<8x256xf32>
    %27 = arith.mulf %26, %23 : vector<8x256xf32>
    %28 = arith.select %25, %23, %27 : vector<8x256xi1>, vector<8x256xf32>
    %c0_11 = arith.constant 0 : index
    %c0_12 = arith.constant 0 : index
    %29 = vector.load %arg4[%c0_11, %c0_12] : memref<8x256xf32, #tpu.memory_space<vmem>>, vector<8x256xf32>
    tpu.vector_store %arg4[%c0_11, %c0_12], %28 {strides = array<i32>} : memref<8x256xf32, #tpu.memory_space<vmem>>, vector<8x256xf32>,
    return
  }
  func.func @transform_0(%arg0: i32) -> (i32, i32) {
    %c0_i32 = arith.constant 0 : i32
    %c0_i32_0 = arith.constant 0 : i32
    return %arg0, %c0_i32 : i32, i32
  }
  func.func @transform_1(%arg0: i32) -> (i32, i32) {
    %c0_i32 = arith.constant 0 : i32
    %c0_i32_0 = arith.constant 0 : i32
    return %arg0, %c0_i32 : i32, i32
  }
  func.func @transform_2(%arg0: i32) -> (i32, i32) {
    %c0_i32 = arith.constant 0 : i32
    %c0_i32_0 = arith.constant 0 : i32
    return %arg0, %c0_i32 : i32, i32
  }
  func.func @transform_3(%arg0: i32) -> (i32, i32) {
    %c0_i32 = arith.constant 0 : i32
    %c0_i32_0 = arith.constant 0 : i32
    return %arg0, %c0_i32 : i32, i32
  }
}

module attributes {stable_mosaic.version = 11 : i64} {
  func.func @_conv_mm_kernel(%arg0: i32, %arg1: i32, %arg2: memref<4x36xf32, #tpu.memory_space<vmem>>, %arg3: memref<1x36x256xf32, #tpu.memory_space<vmem>>, %arg4: memref<4x1xf32, #tpu.memory_space<vmem>>, %arg5: memref<1x4x256xf32, #tpu.memory_space<vmem>>) attributes {dimension_semantics = [#tpu.dimension_semantics<parallel>, #tpu.dimension_semantics<parallel>], iteration_bounds = array<i64: 2, 1>, scalar_prefetch = 0 : i64, scratch_operands = 0 : i64, tpu.core_type = #tpu.core_type<tc>, window_params = [{pipeline_mode = #tpu.pipeline_mode<synchronous>, transform_indices = @transform_0, window_bounds = array<i64: 4, 36>}, {transform_indices = @transform_1, window_bounds = array<i64: 1, 36, 256>}, {pipeline_mode = #tpu.pipeline_mode<synchronous>, transform_indices = @transform_2, window_bounds = array<i64: 4, 1>}, {transform_indices = @transform_3, window_bounds = array<i64: 1, 4, 256>}]} {
    %c0 = arith.constant 0 : index
    %c0_0 = arith.constant 0 : index
    %0 = vector.load %arg2[%c0, %c0_0] : memref<4x36xf32, #tpu.memory_space<vmem>>, vector<4x36xf32>
    %c0_1 = arith.constant 0 : index
    %c0_2 = arith.constant 0 : index
    %c0_3 = arith.constant 0 : index
    %1 = vector.load %arg3[%c0_1, %c0_2, %c0_3] : memref<1x36x256xf32, #tpu.memory_space<vmem>>, vector<1x36x256xf32>
    %2 = vector.shape_cast %1 : vector<1x36x256xf32> to vector<36x256xf32>
    %cst = arith.constant dense<0.000000e+00> : vector<4x256xf32>
    %3 = tpu.matmul %0, %2, %cst {dimension_numbers = #tpu.dot_dimension_numbers<[1], [0], [0], [1], [0, 0, 1, 1], [], []>} : vector<4x36xf32>, vector<36x256xf32>, vector<4x256xf32> -> vector<4x256xf32>
    %c0_4 = arith.constant 0 : index
    %c0_5 = arith.constant 0 : index
    %4 = vector.load %arg4[%c0_4, %c0_5] : memref<4x1xf32, #tpu.memory_space<vmem>>, vector<4x1xf32>
    %5 = vector.broadcast %4 : vector<4x1xf32> to vector<4x256xf32>
    %6 = arith.addf %3, %5 : vector<4x256xf32>
    %c0_6 = arith.constant 0 : index
    %c0_7 = arith.constant 0 : index
    %c0_8 = arith.constant 0 : index
    %7 = vector.load %arg5[%c0_6, %c0_7, %c0_8] : memref<1x4x256xf32, #tpu.memory_space<vmem>>, vector<1x4x256xf32>
    %8 = vector.shape_cast %7 : vector<1x4x256xf32> to vector<4x256xf32>
    %9 = vector.shape_cast %6 : vector<4x256xf32> to vector<1x4x256xf32>
    tpu.vector_store %arg5[%c0_6, %c0_7, %c0_8], %9 {strides = array<i32>} : memref<1x4x256xf32, #tpu.memory_space<vmem>>, vector<1x4x256xf32>,
    return
  }
  func.func @transform_0(%arg0: i32, %arg1: i32) -> (i32, i32) {
    %c0_i32 = arith.constant 0 : i32
    %c0_i32_0 = arith.constant 0 : i32
    %c0_i32_1 = arith.constant 0 : i32
    return %c0_i32, %c0_i32_0 : i32, i32
  }
  func.func @transform_1(%arg0: i32, %arg1: i32) -> (i32, i32, i32) {
    %c0_i32 = arith.constant 0 : i32
    %c0_i32_0 = arith.constant 0 : i32
    return %arg0, %c0_i32, %arg1 : i32, i32, i32
  }
  func.func @transform_2(%arg0: i32, %arg1: i32) -> (i32, i32) {
    %c0_i32 = arith.constant 0 : i32
    %c0_i32_0 = arith.constant 0 : i32
    %c0_i32_1 = arith.constant 0 : i32
    return %c0_i32, %c0_i32_0 : i32, i32
  }
  func.func @transform_3(%arg0: i32, %arg1: i32) -> (i32, i32, i32) {
    %c0_i32 = arith.constant 0 : i32
    %c0_i32_0 = arith.constant 0 : i32
    return %arg0, %c0_i32, %arg1 : i32, i32, i32
  }
}

module attributes {stable_mosaic.version = 11 : i64} {
  func.func @_inorm_lrelu_kernel(%arg0: i32, %arg1: memref<8x64xf32, #tpu.memory_space<vmem>>, %arg2: memref<8x1xf32, #tpu.memory_space<vmem>>, %arg3: memref<8x1xf32, #tpu.memory_space<vmem>>, %arg4: memref<8x64xf32, #tpu.memory_space<vmem>>) attributes {dimension_semantics = [#tpu.dimension_semantics<parallel>], iteration_bounds = array<i64: 1>, scalar_prefetch = 0 : i64, scratch_operands = 0 : i64, tpu.core_type = #tpu.core_type<tc>, window_params = [{transform_indices = @transform_0, window_bounds = array<i64: 8, 64>}, {transform_indices = @transform_1, window_bounds = array<i64: 8, 1>}, {transform_indices = @transform_2, window_bounds = array<i64: 8, 1>}, {transform_indices = @transform_3, window_bounds = array<i64: 8, 64>}]} {
    %c0 = arith.constant 0 : index
    %c0_0 = arith.constant 0 : index
    %0 = vector.load %arg1[%c0, %c0_0] : memref<8x64xf32, #tpu.memory_space<vmem>>, vector<8x64xf32>
    %cst = arith.constant dense<0.000000e+00> : vector<8xf32>
    %1 = vector.multi_reduction <add>, %0, %cst [1] : vector<8x64xf32> to vector<8xf32>
    %2 = vector.shape_cast %1 : vector<8xf32> to vector<8x1xf32>
    %cst_1 = arith.constant 1.562500e-02 : f32
    %3 = vector.broadcast %cst_1 : f32 to vector<8x1xf32>
    %4 = arith.mulf %2, %3 : vector<8x1xf32>
    %5 = arith.mulf %0, %0 : vector<8x64xf32>
    %cst_2 = arith.constant dense<0.000000e+00> : vector<8xf32>
    %6 = vector.multi_reduction <add>, %5, %cst_2 [1] : vector<8x64xf32> to vector<8xf32>
    %7 = vector.shape_cast %6 : vector<8xf32> to vector<8x1xf32>
    %cst_3 = arith.constant 1.562500e-02 : f32
    %8 = vector.broadcast %cst_3 : f32 to vector<8x1xf32>
    %9 = arith.mulf %7, %8 : vector<8x1xf32>
    %10 = arith.mulf %4, %4 : vector<8x1xf32>
    %11 = arith.subf %9, %10 : vector<8x1xf32>
    %c0_4 = arith.constant 0 : index
    %c0_5 = arith.constant 0 : index
    %12 = vector.load %arg2[%c0_4, %c0_5] : memref<8x1xf32, #tpu.memory_space<vmem>>, vector<8x1xf32>
    %cst_6 = arith.constant 9.99999974E-6 : f32
    %13 = vector.broadcast %cst_6 : f32 to vector<8x1xf32>
    %14 = arith.addf %11, %13 : vector<8x1xf32>
    %15 = math.rsqrt %14 : vector<8x1xf32>
    %16 = arith.mulf %12, %15 : vector<8x1xf32>
    %c0_7 = arith.constant 0 : index
    %c0_8 = arith.constant 0 : index
    %17 = vector.load %arg3[%c0_7, %c0_8] : memref<8x1xf32, #tpu.memory_space<vmem>>, vector<8x1xf32>
    %18 = arith.mulf %4, %16 : vector<8x1xf32>
    %19 = arith.subf %17, %18 : vector<8x1xf32>
    %20 = vector.broadcast %16 : vector<8x1xf32> to vector<8x64xf32>
    %21 = arith.mulf %0, %20 : vector<8x64xf32>
    %22 = vector.broadcast %19 : vector<8x1xf32> to vector<8x64xf32>
    %23 = arith.addf %21, %22 : vector<8x64xf32>
    %cst_9 = arith.constant 0.000000e+00 : f32
    %24 = vector.broadcast %cst_9 : f32 to vector<8x64xf32>
    %25 = arith.cmpf oge, %23, %24 : vector<8x64xf32>
    %cst_10 = arith.constant 2.000000e-01 : f32
    %26 = vector.broadcast %cst_10 : f32 to vector<8x64xf32>
    %27 = arith.mulf %26, %23 : vector<8x64xf32>
    %28 = arith.select %25, %23, %27 : vector<8x64xi1>, vector<8x64xf32>
    %c0_11 = arith.constant 0 : index
    %c0_12 = arith.constant 0 : index
    %29 = vector.load %arg4[%c0_11, %c0_12] : memref<8x64xf32, #tpu.memory_space<vmem>>, vector<8x64xf32>
    tpu.vector_store %arg4[%c0_11, %c0_12], %28 {strides = array<i32>} : memref<8x64xf32, #tpu.memory_space<vmem>>, vector<8x64xf32>,
    return
  }
  func.func @transform_0(%arg0: i32) -> (i32, i32) {
    %c0_i32 = arith.constant 0 : i32
    %c0_i32_0 = arith.constant 0 : i32
    return %arg0, %c0_i32 : i32, i32
  }
  func.func @transform_1(%arg0: i32) -> (i32, i32) {
    %c0_i32 = arith.constant 0 : i32
    %c0_i32_0 = arith.constant 0 : i32
    return %arg0, %c0_i32 : i32, i32
  }
  func.func @transform_2(%arg0: i32) -> (i32, i32) {
    %c0_i32 = arith.constant 0 : i32
    %c0_i32_0 = arith.constant 0 : i32
    return %arg0, %c0_i32 : i32, i32
  }
  func.func @transform_3(%arg0: i32) -> (i32, i32) {
    %c0_i32 = arith.constant 0 : i32
    %c0_i32_0 = arith.constant 0 : i32
    return %arg0, %c0_i32 : i32, i32
  }
}

module attributes {stable_mosaic.version = 11 : i64} {
  func.func @_conv_mm_kernel(%arg0: i32, %arg1: i32, %arg2: memref<8x4xf32, #tpu.memory_space<vmem>>, %arg3: memref<1x4x256xf32, #tpu.memory_space<vmem>>, %arg4: memref<8x1xf32, #tpu.memory_space<vmem>>, %arg5: memref<1x8x256xf32, #tpu.memory_space<vmem>>) attributes {dimension_semantics = [#tpu.dimension_semantics<parallel>, #tpu.dimension_semantics<parallel>], iteration_bounds = array<i64: 2, 1>, scalar_prefetch = 0 : i64, scratch_operands = 0 : i64, tpu.core_type = #tpu.core_type<tc>, window_params = [{pipeline_mode = #tpu.pipeline_mode<synchronous>, transform_indices = @transform_0, window_bounds = array<i64: 8, 4>}, {transform_indices = @transform_1, window_bounds = array<i64: 1, 4, 256>}, {pipeline_mode = #tpu.pipeline_mode<synchronous>, transform_indices = @transform_2, window_bounds = array<i64: 8, 1>}, {transform_indices = @transform_3, window_bounds = array<i64: 1, 8, 256>}]} {
    %c0 = arith.constant 0 : index
    %c0_0 = arith.constant 0 : index
    %0 = vector.load %arg2[%c0, %c0_0] : memref<8x4xf32, #tpu.memory_space<vmem>>, vector<8x4xf32>
    %c0_1 = arith.constant 0 : index
    %c0_2 = arith.constant 0 : index
    %c0_3 = arith.constant 0 : index
    %1 = vector.load %arg3[%c0_1, %c0_2, %c0_3] : memref<1x4x256xf32, #tpu.memory_space<vmem>>, vector<1x4x256xf32>
    %2 = vector.shape_cast %1 : vector<1x4x256xf32> to vector<4x256xf32>
    %cst = arith.constant dense<0.000000e+00> : vector<8x256xf32>
    %3 = tpu.matmul %0, %2, %cst {dimension_numbers = #tpu.dot_dimension_numbers<[1], [0], [0], [1], [0, 0, 1, 1], [], []>} : vector<8x4xf32>, vector<4x256xf32>, vector<8x256xf32> -> vector<8x256xf32>
    %c0_4 = arith.constant 0 : index
    %c0_5 = arith.constant 0 : index
    %4 = vector.load %arg4[%c0_4, %c0_5] : memref<8x1xf32, #tpu.memory_space<vmem>>, vector<8x1xf32>
    %5 = vector.broadcast %4 : vector<8x1xf32> to vector<8x256xf32>
    %6 = arith.addf %3, %5 : vector<8x256xf32>
    %c0_6 = arith.constant 0 : index
    %c0_7 = arith.constant 0 : index
    %c0_8 = arith.constant 0 : index
    %7 = vector.load %arg5[%c0_6, %c0_7, %c0_8] : memref<1x8x256xf32, #tpu.memory_space<vmem>>, vector<1x8x256xf32>
    %8 = vector.shape_cast %7 : vector<1x8x256xf32> to vector<8x256xf32>
    %9 = vector.shape_cast %6 : vector<8x256xf32> to vector<1x8x256xf32>
    tpu.vector_store %arg5[%c0_6, %c0_7, %c0_8], %9 {strides = array<i32>} : memref<1x8x256xf32, #tpu.memory_space<vmem>>, vector<1x8x256xf32>,
    return
  }
  func.func @transform_0(%arg0: i32, %arg1: i32) -> (i32, i32) {
    %c0_i32 = arith.constant 0 : i32
    %c0_i32_0 = arith.constant 0 : i32
    %c0_i32_1 = arith.constant 0 : i32
    return %c0_i32, %c0_i32_0 : i32, i32
  }
  func.func @transform_1(%arg0: i32, %arg1: i32) -> (i32, i32, i32) {
    %c0_i32 = arith.constant 0 : i32
    %c0_i32_0 = arith.constant 0 : i32
    return %arg0, %c0_i32, %arg1 : i32, i32, i32
  }
  func.func @transform_2(%arg0: i32, %arg1: i32) -> (i32, i32) {
    %c0_i32 = arith.constant 0 : i32
    %c0_i32_0 = arith.constant 0 : i32
    %c0_i32_1 = arith.constant 0 : i32
    return %c0_i32, %c0_i32_0 : i32, i32
  }
  func.func @transform_3(%arg0: i32, %arg1: i32) -> (i32, i32, i32) {
    %c0_i32 = arith.constant 0 : i32
    %c0_i32_0 = arith.constant 0 : i32
    return %arg0, %c0_i32, %arg1 : i32, i32, i32
  }
}

module attributes {stable_mosaic.version = 11 : i64} {
  func.func @_conv_mm_res_kernel(%arg0: i32, %arg1: i32, %arg2: memref<8x36xf32, #tpu.memory_space<vmem>>, %arg3: memref<1x36x64xf32, #tpu.memory_space<vmem>>, %arg4: memref<8x1xf32, #tpu.memory_space<vmem>>, %arg5: memref<1x8x64xf32, #tpu.memory_space<vmem>>, %arg6: memref<1x8x64xf32, #tpu.memory_space<vmem>>) attributes {dimension_semantics = [#tpu.dimension_semantics<parallel>, #tpu.dimension_semantics<parallel>], iteration_bounds = array<i64: 2, 1>, scalar_prefetch = 0 : i64, scratch_operands = 0 : i64, tpu.core_type = #tpu.core_type<tc>, window_params = [{pipeline_mode = #tpu.pipeline_mode<synchronous>, transform_indices = @transform_0, window_bounds = array<i64: 8, 36>}, {transform_indices = @transform_1, window_bounds = array<i64: 1, 36, 64>}, {pipeline_mode = #tpu.pipeline_mode<synchronous>, transform_indices = @transform_2, window_bounds = array<i64: 8, 1>}, {transform_indices = @transform_3, window_bounds = array<i64: 1, 8, 64>}, {transform_indices = @transform_4, window_bounds = array<i64: 1, 8, 64>}]} {
    %c0 = arith.constant 0 : index
    %c0_0 = arith.constant 0 : index
    %0 = vector.load %arg2[%c0, %c0_0] : memref<8x36xf32, #tpu.memory_space<vmem>>, vector<8x36xf32>
    %c0_1 = arith.constant 0 : index
    %c0_2 = arith.constant 0 : index
    %c0_3 = arith.constant 0 : index
    %1 = vector.load %arg3[%c0_1, %c0_2, %c0_3] : memref<1x36x64xf32, #tpu.memory_space<vmem>>, vector<1x36x64xf32>
    %2 = vector.shape_cast %1 : vector<1x36x64xf32> to vector<36x64xf32>
    %cst = arith.constant dense<0.000000e+00> : vector<8x64xf32>
    %3 = tpu.matmul %0, %2, %cst {dimension_numbers = #tpu.dot_dimension_numbers<[1], [0], [0], [1], [0, 0, 1, 1], [], []>} : vector<8x36xf32>, vector<36x64xf32>, vector<8x64xf32> -> vector<8x64xf32>
    %c0_4 = arith.constant 0 : index
    %c0_5 = arith.constant 0 : index
    %4 = vector.load %arg4[%c0_4, %c0_5] : memref<8x1xf32, #tpu.memory_space<vmem>>, vector<8x1xf32>
    %5 = vector.broadcast %4 : vector<8x1xf32> to vector<8x64xf32>
    %6 = arith.addf %3, %5 : vector<8x64xf32>
    %c0_6 = arith.constant 0 : index
    %c0_7 = arith.constant 0 : index
    %c0_8 = arith.constant 0 : index
    %7 = vector.load %arg5[%c0_6, %c0_7, %c0_8] : memref<1x8x64xf32, #tpu.memory_space<vmem>>, vector<1x8x64xf32>
    %8 = vector.shape_cast %7 : vector<1x8x64xf32> to vector<8x64xf32>
    %9 = arith.addf %6, %8 : vector<8x64xf32>
    %cst_9 = arith.constant 0.707106769 : f32
    %10 = vector.broadcast %cst_9 : f32 to vector<8x64xf32>
    %11 = arith.mulf %9, %10 : vector<8x64xf32>
    %c0_10 = arith.constant 0 : index
    %c0_11 = arith.constant 0 : index
    %c0_12 = arith.constant 0 : index
    %12 = vector.load %arg6[%c0_10, %c0_11, %c0_12] : memref<1x8x64xf32, #tpu.memory_space<vmem>>, vector<1x8x64xf32>
    %13 = vector.shape_cast %12 : vector<1x8x64xf32> to vector<8x64xf32>
    %14 = vector.shape_cast %11 : vector<8x64xf32> to vector<1x8x64xf32>
    tpu.vector_store %arg6[%c0_10, %c0_11, %c0_12], %14 {strides = array<i32>} : memref<1x8x64xf32, #tpu.memory_space<vmem>>, vector<1x8x64xf32>,
    return
  }
  func.func @transform_0(%arg0: i32, %arg1: i32) -> (i32, i32) {
    %c0_i32 = arith.constant 0 : i32
    %c0_i32_0 = arith.constant 0 : i32
    %c0_i32_1 = arith.constant 0 : i32
    return %c0_i32, %c0_i32_0 : i32, i32
  }
  func.func @transform_1(%arg0: i32, %arg1: i32) -> (i32, i32, i32) {
    %c0_i32 = arith.constant 0 : i32
    %c0_i32_0 = arith.constant 0 : i32
    return %arg0, %c0_i32, %arg1 : i32, i32, i32
  }
  func.func @transform_2(%arg0: i32, %arg1: i32) -> (i32, i32) {
    %c0_i32 = arith.constant 0 : i32
    %c0_i32_0 = arith.constant 0 : i32
    %c0_i32_1 = arith.constant 0 : i32
    return %c0_i32, %c0_i32_0 : i32, i32
  }
  func.func @transform_3(%arg0: i32, %arg1: i32) -> (i32, i32, i32) {
    %c0_i32 = arith.constant 0 : i32
    %c0_i32_0 = arith.constant 0 : i32
    return %arg0, %c0_i32, %arg1 : i32, i32, i32
  }
  func.func @transform_4(%arg0: i32, %arg1: i32) -> (i32, i32, i32) {
    %c0_i32 = arith.constant 0 : i32
    %c0_i32_0 = arith.constant 0 : i32
    return %arg0, %c0_i32, %arg1 : i32, i32, i32
  }
}

</mosaic_0001>

<llo_original>
// kernel: tile.0
$region0: #{tile.0}
  %s0 = inlined_call_operand.vmem [shape: f32[2,4], index: 0, kind: input, shape index: {}]
  %s1 = inlined_call_operand.vmem [shape: f32[8,1], index: 1, kind: output, shape index: {}]
  $region1: #{tile.0} parent=0
    #allocation0 [shape = 'u8[4096]{0}', space=vmem, size = 0x1000, scoped, tag = 'scoped mem for input reshape']
    %s3 = sshllo.u32 0, 2
    %v4 = vld [vmem:[%s0] sm:%s3]
    %5 = vst [vmem:[#allocation0] sm:%s3] %v4
    %v6 = vld [vmem:[#allocation0] sm:$0x3]
    %vm7 = vcmask 7168
    %8 = vst.msk [vmem:[%s1] ss:$4 sm:$0x3] %vm7, %v6
    %v9 = vld [vmem:[#allocation0] sm:$0x3]
    %10 = vrot.lane.b32.xlu0 %v9, 127
    %v11 = vpop.permute.xlu0 %10
    %vm12 = vcmask 7168
    %s13 = scalar_lea.vmem %s1, 1
    %14 = vst.msk [vmem:[%s13] ss:$4 sm:$0x3] %vm12, %v11
    %v15 = vld [vmem:[#allocation0] sm:$0x3]
    %16 = vrot.lane.b32.xlu0 %v15, 126
    %v17 = vpop.permute.xlu0 %16
    %vm18 = vcmask 7168
    %s19 = scalar_lea.vmem %s1, 2
    %20 = vst.msk [vmem:[%s19] ss:$4 sm:$0x3] %vm18, %v17
    %v21 = vld [vmem:[#allocation0] sm:$0x3]
    %22 = vrot.lane.b32.xlu0 %v21, 125
    %v23 = vpop.permute.xlu0 %22
    %vm24 = vcmask 7168
    %s25 = scalar_lea.vmem %s1, 3
    %26 = vst.msk [vmem:[%s25] ss:$4 sm:$0x3] %vm24, %v23

// kernel: tile.23
$region0: #{tile.23}
  #allocation0 [shape = 's32[1]{0}', space=sflag, size = 0x4, scoped, tag = 'scoped memory for tile.23']
  %s0 = inlined_call_operand.vmem [shape: f32[4], index: 0, kind: input, shape index: {}]
  %s1 = inlined_call_operand.vmem [shape: f32[2,4], index: 1, kind: output, shape index: {}]
  // Predicated region
  $region2: #{tile.23} parent=0 // pred_check
    _
  $region3: #{tile.23} parent=0 // pred_check_branch
    %3 = sbr.rel (0) target = $region5
  $region4: #{tile.23} parent=0 // pred_region
    _
  $region5: #{tile.23} parent=0 // pred_fallthru
    _
  %v4 = vld [vmem:[%s0] ss:$0 sm:$0xff]
  %5 = vst [vmem:[%s1] sm:$0x3] %v4

// kernel: resblk_forward.6
$region0: #{resblk_forward.6}
  #allocation0 [shape = 'u32[]', space=smem, size = 0x4, offset = 0x4, fixed_abs, tag = 'smem constant byte address 0x4 - core index']
  #allocation1 [shape = 'u32[144,128]{1,0:T(1,128)}', space=vmem, size = 0x12000, scoped, tag = 'internal scratch']
  %s0 = inlined_call_operand.vmem [shape: f32[8,256], index: 0, kind: input, shape index: {}]
  %s1 = inlined_call_operand.vmem [shape: f32[8,1], index: 1, kind: input, shape index: {}]
  %s2 = inlined_call_operand.vmem [shape: f32[8,1], index: 2, kind: input, shape index: {}]
  %s3 = inlined_call_operand.vmem [shape: f32[8,256], index: 3, kind: output, shape index: {}]
  %s4 = sld [smem:[#allocation0]]
  $region22: #{resblk_forward.6} parent=0
    _
  %s6 = ssub.s32 1, %s4
  %s7 = scalar_select 0, %s6, %s4
  // Predicated region
  $region2: #{resblk_forward.6} parent=0 // pred_check
    _
  $region3: #{resblk_forward.6} parent=0 // pred_check_branch
    %9 = sbr.rel (0) target = $region5
  $region4: #{resblk_forward.6} parent=0 // pred_region
    _
  $region5: #{resblk_forward.6} parent=0 // pred_fallthru
    _
  // Predicated region
  $region6: #{resblk_forward.6} parent=0 // pred_check
    _
  $region7: #{resblk_forward.6} parent=0 // pred_check_branch
    %11 = sbr.rel (0) target = $region9
  $region8: #{resblk_forward.6} parent=0 // pred_region
    _
  $region9: #{resblk_forward.6} parent=0 // pred_fallthru
    _
  // Predicated region
  $region10: #{resblk_forward.6} parent=0 // pred_check
    _
  $region11: #{resblk_forward.6} parent=0 // pred_check_branch
    %13 = sbr.rel (0) target = $region13
  $region12: #{resblk_forward.6} parent=0 // pred_region
    _
  $region13: #{resblk_forward.6} parent=0 // pred_fallthru
    _
  %v14 = vld [vmem:[%s0] sm:$0xff]
  %v15 = vld [vmem:[%s0 + $0x8] sm:$0xff]
  %v16 = vadd.f32 %v14, %v15
  %17 = vadd.xlane.f32.xlu0 %v16
  %v18 = vpop.xlane.xlu0 %17
  %v19 = vmul.f32 %v18, 0.00390625
  %v20 = vmul.f32 %v14, %v14
  %v21 = vmul.f32 %v15, %v15
  %v22 = vadd.f32 %v20, %v21
  %23 = vadd.xlane.f32.xlu0 %v22
  %v24 = vpop.xlane.xlu0 %23
  %v25 = vmul.f32 %v24, 0.00390625
  %v26 = vmul.f32 %v19, %v19
  %v27 = vsub.f32 %v25, %v26
  %v28 = vld [vmem:[%s1] sm:$0xff]
  %v29 = vadd.f32 %v27, 1e-05
  %v30 = vrsqrt.pop %v29
  %v31 = vmul.f32 %v28, %v30
  %v32 = vld [vmem:[%s2] sm:$0xff]
  %v33 = vmul.f32 %v19, %v31
  %v34 = vsub.f32 %v32, %v33
  %36 = vset.pattern.permute.xlu0 0
  %37 = vperm.xlu0 %36, %v31
  %v38 = vpop.permute.xlu0 %37
  %v40 = vmul.f32 %v14, %v38
  %v41 = vmul.f32 %v15, %v38
  %43 = vset.pattern.permute.xlu0 0
  %44 = vperm.xlu0 %43, %v34
  %v45 = vpop.permute.xlu0 %44
  %v47 = vadd.f32 %v40, %v45
  %v48 = vadd.f32 %v41, %v45
  %vm49 = vcmp.ge.f32.partialorder %v47, 0.0
  %vm50 = vcmp.ge.f32.partialorder %v48, 0.0
  %v51 = vmul.f32 %v47, 0.2
  %v52 = vmul.f32 %v48, 0.2
  %v53 = vsel %vm49, %v47, %v51
  %v54 = vsel %vm50, %v48, %v52
  %55 = vst [vmem:[%s3] sm:$0xff] %v53
  %56 = vst [vmem:[%s3 + $0x8] sm:$0xff] %v54
  // Predicated region
  $region14: #{resblk_forward.6} parent=0 // pred_check
    _
  $region15: #{resblk_forward.6} parent=0 // pred_check_branch
    %58 = sbr.rel (0) target = $region17
  $region16: #{resblk_forward.6} parent=0 // pred_region
    _
  $region17: #{resblk_forward.6} parent=0 // pred_fallthru
    _
  // Predicated region
  $region18: #{resblk_forward.6} parent=0 // pred_check
    _
  $region19: #{resblk_forward.6} parent=0 // pred_check_branch
    %60 = sbr.rel (0) target = $region21
  $region20: #{resblk_forward.6} parent=0 // pred_region
    _
  $region21: #{resblk_forward.6} parent=0 // pred_fallthru
    _

// kernel: resblk_forward.7
$region0: #{resblk_forward.7}
  #allocation0 [shape = 'u32[]', space=smem, size = 0x4, offset = 0x4, fixed_abs, tag = 'smem constant byte address 0x4 - core index']
  #allocation1 [shape = 'u32[144,128]{1,0:T(1,128)}', space=vmem, size = 0x12000, scoped, tag = 'internal scratch']
  %s0 = inlined_call_operand.vmem [shape: f32[4,36], index: 0, kind: input, shape index: {}]
  %s1 = inlined_call_operand.vmem [shape: f32[2,36,256], index: 1, kind: input, shape index: {}]
  %s2 = inlined_call_operand.vmem [shape: f32[4,1], index: 2, kind: input, shape index: {}]
  %s3 = inlined_call_operand.vmem [shape: f32[2,4,256], index: 3, kind: output, shape index: {}]
  %s4 = sld [smem:[#allocation0]]
  $region45: #{resblk_forward.7} parent=0
    _
  %s6 = ssub.s32 1, %s4
  %s7 = scalar_select 0, %s6, %s4
  loop: start=0, step=1, limit=4
  $region2: #{resblk_forward.7} parent=0 // loop_pre_header
    _
  $region3: #{resblk_forward.7} parent=0 // loop_header
    %s9 = sphi 0, %s13
    %p10 = scmp.ge.s32.totalorder %s9, 4
    %s16 = sphi 0, %s28
    %s17 = sphi 0, %s24
    %s18 = sphi 0, %s16
    %s19 = sphi 0, %s17
    %s20 = sphi 0, %s18
    %s21 = sphi 0, %s19
    %s29 = sphi 0, %s29
    %s31 = sphi 0, %s29
    %s32 = sphi 0, %s31
    %s46 = sphi 0, %s32
    %s54 = sphi 0, %s56
    %s57 = sphi 0, %s54
    %s58 = sphi 0, %s57
    %s74 = sphi 0, %s58
    %s78 = sphi 0, %s78
    %s80 = sphi 0, %s78
    %s81 = sphi 0, %s80
    %s95 = sphi 0, %s81
    %s103 = sphi 0, %s105
    %s106 = sphi 0, %s103
    %s107 = sphi 0, %s106
    %s123 = sphi 0, %s107
  $region4: #{resblk_forward.7} parent=0 // loop_header_branch
    %12 = sbr.rel (%p10) target = $region8
  $region5: #{resblk_forward.7} parent=0 // loop_body
    %s14 = ssub.s32 %s9, 1
    %s15 = ssub.s32 %s9, 2
    %s22 = sadd.s32 1, %s17
    %p23 = scmp.ge.s32.totalorder %s22, 1
    %s24 = scalar_select %p23, 0, %s22
    %s25 = sadd.s32 1, %s16
    %s26 = scalar_select %p23, %s25, %s16
    %p27 = scmp.ge.s32.totalorder %s26, 2
    %s28 = scalar_select %p27, 0, %s26
    %s30 = sadd.s32 %s29, 1
    %p33 = scmp.eq.s32.totalorder %s9, 1
    %p34 = scmp.ne.s32.totalorder %s29, %s31
    %p35 = scmp.eq.s32.totalorder %s9, 0
    %p36 = por %p34, %p35
    %p37 = scmp.ne.s32.totalorder %s29, %s31
    %p38 = scmp.eq.s32.totalorder %s14, 1
    %p39 = por %p37, %p38
    %p40 = scmp.ne.s32.totalorder %s31, %s32
    %p41 = scmp.eq.s32.totalorder %s14, 0
    %p42 = por %p40, %p41
    %p43 = scmp.ne.s32.totalorder %s31, %s32
    %p44 = scmp.eq.s32.totalorder %s15, 1
    %p45 = por %p43, %p44
    %p47 = scmp.ne.s32.totalorder %s32, %s46
    %p48 = scmp.eq.s32.totalorder %s15, 0
    %p49 = por %p47, %p48
    %s50 = ssub.s32 %s16, %s28
    %s51 = ssub.s32 %s17, %s24
    %s52 = sor.u32 %s50, %s51
    %p53 = scmp.eq.s32.totalorder %s52, 0
    %s55 = sadd.s32 %s54, 1
    %s56 = scalar_select %p53, %s54, %s55
    %p59 = pneg %p53
    %p60 = scmp.eq.s32.totalorder %s9, 1
    %p61 = por %p59, %p60
    %p62 = scmp.ne.s32.totalorder %s54, %s57
    %p63 = scmp.eq.s32.totalorder %s9, 0
    %p64 = por %p62, %p63
    %p65 = scmp.ne.s32.totalorder %s54, %s57
    %p66 = scmp.eq.s32.totalorder %s14, 1
    %p67 = por %p65, %p66
    %p68 = scmp.ne.s32.totalorder %s57, %s58
    %p69 = scmp.eq.s32.totalorder %s14, 0
    %p70 = por %p68, %p69
    %p71 = scmp.ne.s32.totalorder %s57, %s58
    %p72 = scmp.eq.s32.totalorder %s15, 1
    %p73 = por %p71, %p72
    %p75 = scmp.ne.s32.totalorder %s58, %s74
    %p76 = scmp.eq.s32.totalorder %s15, 0
    %p77 = por %p75, %p76
    %s79 = sadd.s32 %s78, 1
    %p82 = scmp.eq.s32.totalorder %s9, 1
    %p83 = scmp.ne.s32.totalorder %s78, %s80
    %p84 = scmp.eq.s32.totalorder %s9, 0
    %p85 = por %p83, %p84
    %p86 = scmp.ne.s32.totalorder %s78, %s80
    %p87 = scmp.eq.s32.totalorder %s14, 1
    %p88 = por %p86, %p87
    %p89 = scmp.ne.s32.totalorder %s80, %s81
    %p90 = scmp.eq.s32.totalorder %s14, 0
    %p91 = por %p89, %p90
    %p92 = scmp.ne.s32.totalorder %s80, %s81
    %p93 = scmp.eq.s32.totalorder %s15, 1
    %p94 = por %p92, %p93
    %p96 = scmp.ne.s32.totalorder %s81, %s95
    %p97 = scmp.eq.s32.totalorder %s15, 0
    %p98 = por %p96, %p97
    %s99 = ssub.s32 %s16, %s28
    %s100 = ssub.s32 %s17, %s24
    %s101 = sor.u32 %s99, %s100
    %p102 = scmp.eq.s32.totalorder %s101, 0
    %s104 = sadd.s32 %s103, 1
    %s105 = scalar_select %p102, %s103, %s104
    %p108 = pneg %p102
    %p109 = scmp.eq.s32.totalorder %s9, 1
    %p110 = por %p108, %p109
    %p111 = scmp.ne.s32.totalorder %s103, %s106
    %p112 = scmp.eq.s32.totalorder %s9, 0
    %p113 = por %p111, %p112
    %p114 = scmp.ne.s32.totalorder %s103, %s106
    %p115 = scmp.eq.s32.totalorder %s14, 1
    %p116 = por %p114, %p115
    %p117 = scmp.ne.s32.totalorder %s106, %s107
    %p118 = scmp.eq.s32.totalorder %s14, 0
    %p119 = por %p117, %p118
    %p120 = scmp.ne.s32.totalorder %s106, %s107
    %p121 = scmp.eq.s32.totalorder %s15, 1
    %p122 = por %p120, %p121
    %p124 = scmp.ne.s32.totalorder %s107, %s123
    %p125 = scmp.eq.s32.totalorder %s15, 0
    %p126 = por %p124, %p125
    %p127 = scmp.le.s32.totalorder 1, %s9
    %p128 = scmp.lt.s32.totalorder %s9, 3
    %p129 = pnand %p127, %p128
    %p130 = pneg %p129
    // Predicated region
    $region9: #{resblk_forward.7} parent=5 // pred_check
      _
    $region10: #{resblk_forward.7} parent=5 // pred_check_branch
      %132 = sbr.rel (%p129) target = $region12
    $region11: #{resblk_forward.7} parent=5 // pred_region
      %s133 = ssub.s32 %s9, 1
      // Predicated region
      $region13: #{resblk_forward.7} parent=11 // pred_check
        %p134 = pneg %p42
      $region14: #{resblk_forward.7} parent=11 // pred_check_branch
        %136 = sbr.rel (%p134) target = $region16
      $region15: #{resblk_forward.7} parent=11 // pred_region
        _
      $region16: #{resblk_forward.7} parent=11 // pred_fallthru
        _
      // Predicated region
      $region17: #{resblk_forward.7} parent=11 // pred_check
        %p137 = pneg %p91
      $region18: #{resblk_forward.7} parent=11 // pred_check_branch
        %139 = sbr.rel (%p137) target = $region20
      $region19: #{resblk_forward.7} parent=11 // pred_region
        _
      $region20: #{resblk_forward.7} parent=11 // pred_fallthru
        _
    $region12: #{resblk_forward.7} parent=5 // pred_fallthru
      _
    %p140 = scmp.lt.s32.totalorder %s9, 2
    // Predicated region
    $region21: #{resblk_forward.7} parent=5 // pred_check
      %p141 = pneg %p140
    $region22: #{resblk_forward.7} parent=5 // pred_check_branch
      %143 = sbr.rel (%p141) target = $region24
    $region23: #{resblk_forward.7} parent=5 // pred_region
      // Predicated region
      $region25: #{resblk_forward.7} parent=23 // pred_check
        %p144 = pneg %p64
      $region26: #{resblk_forward.7} parent=23 // pred_check_branch
        %146 = sbr.rel (%p144) target = $region28
      $region27: #{resblk_forward.7} parent=23 // pred_region
        %s147 = smul.u32 2, %s17
        %p148 = scmp.lt.s32.totalorder %s16, 1
        %s149 = scalar_select %p148, %s16, 1
        %p150 = scmp.lt.s32.totalorder %s147, 1
        %s151 = scalar_select %p150, %s147, 1
        %s152 = smul.addr %s149, 10
        %s153 = sadd.s32 %s151, %s152
        %s154 = smul.addr %s153, 8
        %s155 = scalar_lea.vmem %s1, %s154
        %s156 = smul.u32 2, %s17
      $region28: #{resblk_forward.7} parent=23 // pred_fallthru
        _
    $region24: #{resblk_forward.7} parent=5 // pred_fallthru
      _
    %p157 = scmp.le.s32.totalorder 1, %s9
    %p158 = scmp.lt.s32.totalorder %s9, 3
    %p159 = pnand %p157, %p158
    %p160 = pneg %p159
    // Predicated region
    $region29: #{resblk_forward.7} parent=5 // pred_check
      _
    $region30: #{resblk_forward.7} parent=5 // pred_check_branch
      %162 = sbr.rel (%p159) target = $region32
    $region31: #{resblk_forward.7} parent=5 // pred_region
      %s163 = ssub.s32 %s9, 1
      %p164 = pneg %p42
      %p165 = pneg %p39
      %s166 = smul.u32 2, %s19
      %p167 = scmp.lt.s32.totalorder %s18, 1
      %s168 = scalar_select %p167, %s18, 1
      %p169 = scmp.lt.s32.totalorder %s166, 1
      %s170 = scalar_select %p169, %s166, 1
      %s171 = smul.addr %s168, 10
      %s172 = sadd.s32 %s170, %s171
      %s173 = smul.addr %s172, 8
      %s174 = scalar_lea.vmem %s1, %s173
      %p175 = pneg %p70
      %p176 = pneg %p67
      %p177 = pneg %p91
      %p178 = pneg %p88
      %p179 = pneg %p119
      %p180 = pneg %p116
      %s181 = smul.u32 2, %s19
      %p182 = scmp.lt.s32.totalorder %s18, 1
      %s183 = scalar_select %p182, %s18, 1
      %p184 = scmp.lt.s32.totalorder %s181, 1
      %s185 = scalar_select %p184, %s181, 1
      %s186 = smul.addr %s183, 2
      %s187 = sadd.s32 %s185, %s186
      %s188 = smul.addr %s187, 4
      %s189 = scalar_lea.vmem %s3, %s188
      %s190 = smul.u32 2, %s19
      %p191 = scmp.lt.s32.totalorder %s18, 1
      %s192 = scalar_select %p191, %s18, 1
      %p193 = scmp.lt.s32.totalorder %s190, 1
      %s194 = scalar_select %p193, %s190, 1
      %s195 = smul.addr %s192, 10
      %s196 = sadd.s32 %s194, %s195
      %s197 = smul.addr %s196, 8
      %s198 = scalar_lea.vmem %s1, %s197
      %s199 = smul.u32 2, %s19
      %s200 = smul.u32 2, %s19
      %p201 = scmp.lt.s32.totalorder %s18, 1
      %s202 = scalar_select %p201, %s18, 1
      %p203 = scmp.lt.s32.totalorder %s200, 1
      %s204 = scalar_select %p203, %s200, 1
      %s205 = smul.addr %s202, 2
      %s206 = sadd.s32 %s204, %s205
      %s207 = smul.addr %s206, 4
      %s208 = scalar_lea.vmem %s3, %s207
      %s209 = smul.u32 2, %s19
      %v210 = vld [vmem:[%s0] sm:$0xf]
      %v211 = vld [vmem:[%s198] sm:$0xff]
      %v212 = vld [vmem:[%s198 + $0x8] sm:$0xff]
      %v213 = vld [vmem:[%s198 + $0x10] sm:$0xff]
      %v214 = vld [vmem:[%s198 + $0x18] sm:$0xff]
      %v215 = vld [vmem:[%s198 + $0x20] sm:$0xff]
      %v216 = vld [vmem:[%s198 + $0x28] sm:$0xff]
      %v217 = vld [vmem:[%s198 + $0x30] sm:$0xff]
      %v218 = vld [vmem:[%s198 + $0x38] sm:$0xff]
      %v219 = vld [vmem:[%s198 + $0x40] sm:$0xf]
      %v220 = vld [vmem:[%s198 + $0x48] sm:$0xf]
      %v221 = vld [vmem:[%s2] sm:$0xf]
      %223 = vset.pattern.permute.xlu0 0
      %224 = vperm.xlu0 %223, %v221
      %v225 = vpop.permute.xlu0 %224
      %vm227 = vcmask 293888
      %v229 = vsel %vm227, %v210, 0
      %vm231 = vcmask 1043456
      %v233 = vsel %vm231, %v219, 0
      %v236 = vsel %vm231, %v220, 0
      %238 = vmatprep.subr.mxu0 %v212
      %239 = vmatpush1.msra.mxu0 %v211
      %240 = vmatprep.subr.mxu0 %v214
      %241 = vmatpush1.msra.mxu0 %v213
      %242 = vmatprep.subr.mxu0 %v216
      %243 = vmatpush1.msra.mxu0 %v215
      %244 = vmatprep.subr.mxu0 %v218
      %245 = vmatpush1.msra.mxu0 %v217
      %246 = vmatprep.subr.mxu0 %v236
      %247 = vmatpush1.msra.mxu0 %v233
      %248 = vmatprep.subr.mxu0 0.0
      %249 = vmatpush1.msra.mxu0 0.0
      %250 = vmatprep.subr.mxu0 0.0
      %251 = vmatpush1.msra.mxu0 0.0
      %252 = vmatprep.subr.mxu0 0.0
      %253 = vmatpush1.msra.mxu0 0.0
      %254 = vmatprep.subr.mxu0 0.0
      %255 = vmatpush1.msra.mxu0 0.0
      %256 = vmatprep.subr.mxu0 0.0
      %257 = vmatpush1.msra.mxu0 0.0
      %258 = vmatprep.subr.mxu0 0.0
      %259 = vmatpush1.msra.mxu0 0.0
      %260 = vmatprep.subr.mxu0 0.0
      %261 = vmatpush1.msra.mxu0 0.0
      %262 = vmatprep.subr.mxu0 0.0
      %263 = vmatpush1.msra.mxu0 0.0
      %264 = vmatprep.subr.mxu0 0.0
      %265 = vmatpush1.msra.mxu0 0.0
      %266 = vmatprep.subr.mxu0 0.0
      %267 = vmatpush1.msra.mxu0 0.0
      %268 = vmatprep.subr.mxu0 0.0
      %269 = vmatpush1.msra.mxu0 0.0
      %270 = vmatprep.subr.mxu0 0.0
      %271 = vmatpush1.msra.mxu0 0.0
      %272 = vmatprep.subr.mxu0 0.0
      %273 = vmatpush1.msra.mxu0 0.0
      %274 = vmatprep.subr.mxu0 0.0
      %275 = vmatpush1.msra.mxu0 0.0
      %276 = vmatprep.subr.mxu0 0.0
      %277 = vmatpush1.msra.mxu0 0.0
      %278 = vmatprep.subr.mxu0 0.0
      %279 = vmatpush1.msra.mxu0 0.0
      %280 = vmatprep.subr.mxu0 0.0
      %281 = vmatpush1.msra.mxu0 0.0
      %282 = vmatprep.subr.mxu0 0.0
      %283 = vmatpush1.msra.mxu0 0.0
      %284 = vmatprep.subr.mxu0 0.0
      %285 = vmatpush1.msra.mxu0 0.0
      %286 = vmatprep.subr.mxu0 0.0
      %287 = vmatpush1.msra.mxu0 0.0
      %288 = vmatprep.subr.mxu0 0.0
      %289 = vmatpush1.msra.mxu0 0.0
      %290 = vmatprep.subr.mxu0 0.0
      %291 = vmatpush1.msra.mxu0 0.0
      %292 = vmatprep.subr.mxu0 0.0
      %293 = vmatpush1.msra.mxu0 0.0
      %294 = vmatprep.subr.mxu0 0.0
      %295 = vmatpush1.msra.mxu0 0.0
      %296 = vmatprep.subr.mxu0 0.0
      %297 = vmatpush1.msra.mxu0 0.0
      %298 = vmatprep.subr.mxu0 0.0
      %299 = vmatpush1.msra.mxu0 0.0
      %300 = vmatprep.subr.mxu0 0.0
      %301 = vmatpush1.msra.mxu0 0.0
      %302 = vmatprep.mubr.f32.mxu0 0.0
      %303 = vmatmul.mubr.f32.gmra.mrb[0].mxu0 %v229
      %v304 = vpop.f32.mrb[0].mxu0
      %v305 = vadd.f32 %v225, %v304
      %v306 = vpop.f32.mrb[0].mxu0
      %v307 = vadd.f32 %v225, %v306
      %308 = vdwg.mxu0
      %v311 = vcombine.low %v305, %v307
      %313 = vst [vmem:[%s208] sm:$0xff] %v311
      %s314 = smul.u32 2, %s19
      %p315 = scmp.lt.s32.totalorder %s18, 1
      %s316 = scalar_select %p315, %s18, 1
      %p317 = scmp.lt.s32.totalorder %s314, 1
      %s318 = scalar_select %p317, %s314, 1
      %s319 = smul.addr %s316, 2
      %s320 = sadd.s32 %s318, %s319
      %s321 = smul.addr %s320, 4
      %s322 = scalar_lea.vmem %s3, %s321
      // Predicated region
      $region33: #{resblk_forward.7} parent=31 // pred_check
        %p323 = pneg %p116
      $region34: #{resblk_forward.7} parent=31 // pred_check_branch
        %325 = sbr.rel (%p323) target = $region36
      $region35: #{resblk_forward.7} parent=31 // pred_region
        %s326 = smul.u32 2, %s19
      $region36: #{resblk_forward.7} parent=31 // pred_fallthru
        _
    $region32: #{resblk_forward.7} parent=5 // pred_fallthru
      _
    %p327 = scmp.le.s32.totalorder 2, %s9
    // Predicated region
    $region37: #{resblk_forward.7} parent=5 // pred_check
      %p328 = pneg %p327
    $region38: #{resblk_forward.7} parent=5 // pred_check_branch
      %330 = sbr.rel (%p328) target = $region40
    $region39: #{resblk_forward.7} parent=5 // pred_region
      %s331 = ssub.s32 %s9, 2
      // Predicated region
      $region41: #{resblk_forward.7} parent=39 // pred_check
        %p332 = pneg %p122
      $region42: #{resblk_forward.7} parent=39 // pred_check_branch
        %334 = sbr.rel (%p332) target = $region44
      $region43: #{resblk_forward.7} parent=39 // pred_region
        %s335 = smul.u32 2, %s21
        %p336 = scmp.lt.s32.totalorder %s20, 1
        %s337 = scalar_select %p336, %s20, 1
        %p338 = scmp.lt.s32.totalorder %s335, 1
        %s339 = scalar_select %p338, %s335, 1
        %s340 = smul.addr %s337, 2
        %s341 = sadd.s32 %s339, %s340
        %s342 = smul.addr %s341, 4
        %s343 = scalar_lea.vmem %s3, %s342
      $region44: #{resblk_forward.7} parent=39 // pred_fallthru
        _
    $region40: #{resblk_forward.7} parent=5 // pred_fallthru
      _
  $region6: #{resblk_forward.7} parent=0 // loop_footer
    %s13 = sadd.s32 1, %s9
  $region7: #{resblk_forward.7} parent=0 // loop_footer_branch
    %8 = sbr.rel target = $region3
  $region8: #{resblk_forward.7} parent=0 // loop_exit
    _

// kernel: resblk_forward.8
$region0: #{resblk_forward.8}
  #allocation0 [shape = 'u32[]', space=smem, size = 0x4, offset = 0x4, fixed_abs, tag = 'smem constant byte address 0x4 - core index']
  #allocation1 [shape = 'u32[144,128]{1,0:T(1,128)}', space=vmem, size = 0x12000, scoped, tag = 'internal scratch']
  %s0 = inlined_call_operand.vmem [shape: f32[8,64], index: 0, kind: input, shape index: {}]
  %s1 = inlined_call_operand.vmem [shape: f32[8,1], index: 1, kind: input, shape index: {}]
  %s2 = inlined_call_operand.vmem [shape: f32[8,1], index: 2, kind: input, shape index: {}]
  %s3 = inlined_call_operand.vmem [shape: f32[8,64], index: 3, kind: output, shape index: {}]
  %s4 = sld [smem:[#allocation0]]
  $region22: #{resblk_forward.8} parent=0
    _
  %s6 = ssub.s32 1, %s4
  %s7 = scalar_select 0, %s6, %s4
  // Predicated region
  $region2: #{resblk_forward.8} parent=0 // pred_check
    _
  $region3: #{resblk_forward.8} parent=0 // pred_check_branch
    %9 = sbr.rel (0) target = $region5
  $region4: #{resblk_forward.8} parent=0 // pred_region
    _
  $region5: #{resblk_forward.8} parent=0 // pred_fallthru
    _
  // Predicated region
  $region6: #{resblk_forward.8} parent=0 // pred_check
    _
  $region7: #{resblk_forward.8} parent=0 // pred_check_branch
    %11 = sbr.rel (0) target = $region9
  $region8: #{resblk_forward.8} parent=0 // pred_region
    _
  $region9: #{resblk_forward.8} parent=0 // pred_fallthru
    _
  // Predicated region
  $region10: #{resblk_forward.8} parent=0 // pred_check
    _
  $region11: #{resblk_forward.8} parent=0 // pred_check_branch
    %13 = sbr.rel (0) target = $region13
  $region12: #{resblk_forward.8} parent=0 // pred_region
    _
  $region13: #{resblk_forward.8} parent=0 // pred_fallthru
    _
  %v14 = vld [vmem:[%s0] sm:$0xff]
  %vm15 = vcmask 523264
  %v16 = vsel %vm15, %v14, 0.0
  %17 = vadd.xlane.f32.xlu0 %v16
  %v18 = vpop.xlane.xlu0 %17
  %v19 = vmul.f32 %v18, 0.015625
  %v20 = vmul.f32 %v14, %v14
  %v21 = vsel %vm15, %v20, 0.0
  %22 = vadd.xlane.f32.xlu0 %v21
  %v23 = vpop.xlane.xlu0 %22
  %v24 = vmul.f32 %v23, 0.015625
  %v25 = vmul.f32 %v19, %v19
  %v26 = vsub.f32 %v24, %v25
  %v27 = vld [vmem:[%s1] sm:$0xff]
  %v28 = vadd.f32 %v26, 1e-05
  %v29 = vrsqrt.pop %v28
  %v30 = vmul.f32 %v27, %v29
  %v31 = vld [vmem:[%s2] sm:$0xff]
  %v32 = vmul.f32 %v19, %v30
  %v33 = vsub.f32 %v31, %v32
  %35 = vset.pattern.permute.xlu0 0
  %36 = vperm.xlu0 %35, %v30
  %v37 = vpop.permute.xlu0 %36
  %v39 = vmul.f32 %v14, %v37
  %41 = vset.pattern.permute.xlu0 0
  %42 = vperm.xlu0 %41, %v33
  %v43 = vpop.permute.xlu0 %42
  %v45 = vadd.f32 %v39, %v43
  %vm46 = vcmp.ge.f32.partialorder %v45, 0.0
  %v47 = vmul.f32 %v45, 0.2
  %v48 = vsel %vm46, %v45, %v47
  %49 = vst.msk [vmem:[%s3] sm:$0xff] %vm15, %v48
  // Predicated region
  $region14: #{resblk_forward.8} parent=0 // pred_check
    _
  $region15: #{resblk_forward.8} parent=0 // pred_check_branch
    %51 = sbr.rel (0) target = $region17
  $region16: #{resblk_forward.8} parent=0 // pred_region
    _
  $region17: #{resblk_forward.8} parent=0 // pred_fallthru
    _
  // Predicated region
  $region18: #{resblk_forward.8} parent=0 // pred_check
    _
  $region19: #{resblk_forward.8} parent=0 // pred_check_branch
    %53 = sbr.rel (0) target = $region21
  $region20: #{resblk_forward.8} parent=0 // pred_region
    _
  $region21: #{resblk_forward.8} parent=0 // pred_fallthru
    _

// kernel: resblk_forward.5
$region0: #{resblk_forward.5}
  #allocation0 [shape = 'u32[]', space=smem, size = 0x4, offset = 0x4, fixed_abs, tag = 'smem constant byte address 0x4 - core index']
  #allocation1 [shape = 'u32[144,128]{1,0:T(1,128)}', space=vmem, size = 0x12000, scoped, tag = 'internal scratch']
  %s0 = inlined_call_operand.vmem [shape: f32[8,4], index: 0, kind: input, shape index: {}]
  %s1 = inlined_call_operand.vmem [shape: f32[2,4,256], index: 1, kind: input, shape index: {}]
  %s2 = inlined_call_operand.vmem [shape: f32[8,1], index: 2, kind: input, shape index: {}]
  %s3 = inlined_call_operand.vmem [shape: f32[2,8,256], index: 3, kind: output, shape index: {}]
  %s4 = sld [smem:[#allocation0]]
  $region45: #{resblk_forward.5} parent=0
    _
  %s6 = ssub.s32 1, %s4
  %s7 = scalar_select 0, %s6, %s4
  loop: start=0, step=1, limit=4
  $region2: #{resblk_forward.5} parent=0 // loop_pre_header
    _
  $region3: #{resblk_forward.5} parent=0 // loop_header
    %s9 = sphi 0, %s13
    %p10 = scmp.ge.s32.totalorder %s9, 4
    %s16 = sphi 0, %s28
    %s17 = sphi 0, %s24
    %s18 = sphi 0, %s16
    %s19 = sphi 0, %s17
    %s20 = sphi 0, %s18
    %s21 = sphi 0, %s19
    %s29 = sphi 0, %s29
    %s31 = sphi 0, %s29
    %s32 = sphi 0, %s31
    %s46 = sphi 0, %s32
    %s54 = sphi 0, %s56
    %s57 = sphi 0, %s54
    %s58 = sphi 0, %s57
    %s74 = sphi 0, %s58
    %s78 = sphi 0, %s78
    %s80 = sphi 0, %s78
    %s81 = sphi 0, %s80
    %s95 = sphi 0, %s81
    %s103 = sphi 0, %s105
    %s106 = sphi 0, %s103
    %s107 = sphi 0, %s106
    %s123 = sphi 0, %s107
  $region4: #{resblk_forward.5} parent=0 // loop_header_branch
    %12 = sbr.rel (%p10) target = $region8
  $region5: #{resblk_forward.5} parent=0 // loop_body
    %s14 = ssub.s32 %s9, 1
    %s15 = ssub.s32 %s9, 2
    %s22 = sadd.s32 1, %s17
    %p23 = scmp.ge.s32.totalorder %s22, 1
    %s24 = scalar_select %p23, 0, %s22
    %s25 = sadd.s32 1, %s16
    %s26 = scalar_select %p23, %s25, %s16
    %p27 = scmp.ge.s32.totalorder %s26, 2
    %s28 = scalar_select %p27, 0, %s26
    %s30 = sadd.s32 %s29, 1
    %p33 = scmp.eq.s32.totalorder %s9, 1
    %p34 = scmp.ne.s32.totalorder %s29, %s31
    %p35 = scmp.eq.s32.totalorder %s9, 0
    %p36 = por %p34, %p35
    %p37 = scmp.ne.s32.totalorder %s29, %s31
    %p38 = scmp.eq.s32.totalorder %s14, 1
    %p39 = por %p37, %p38
    %p40 = scmp.ne.s32.totalorder %s31, %s32
    %p41 = scmp.eq.s32.totalorder %s14, 0
    %p42 = por %p40, %p41
    %p43 = scmp.ne.s32.totalorder %s31, %s32
    %p44 = scmp.eq.s32.totalorder %s15, 1
    %p45 = por %p43, %p44
    %p47 = scmp.ne.s32.totalorder %s32, %s46
    %p48 = scmp.eq.s32.totalorder %s15, 0
    %p49 = por %p47, %p48
    %s50 = ssub.s32 %s16, %s28
    %s51 = ssub.s32 %s17, %s24
    %s52 = sor.u32 %s50, %s51
    %p53 = scmp.eq.s32.totalorder %s52, 0
    %s55 = sadd.s32 %s54, 1
    %s56 = scalar_select %p53, %s54, %s55
    %p59 = pneg %p53
    %p60 = scmp.eq.s32.totalorder %s9, 1
    %p61 = por %p59, %p60
    %p62 = scmp.ne.s32.totalorder %s54, %s57
    %p63 = scmp.eq.s32.totalorder %s9, 0
    %p64 = por %p62, %p63
    %p65 = scmp.ne.s32.totalorder %s54, %s57
    %p66 = scmp.eq.s32.totalorder %s14, 1
    %p67 = por %p65, %p66
    %p68 = scmp.ne.s32.totalorder %s57, %s58
    %p69 = scmp.eq.s32.totalorder %s14, 0
    %p70 = por %p68, %p69
    %p71 = scmp.ne.s32.totalorder %s57, %s58
    %p72 = scmp.eq.s32.totalorder %s15, 1
    %p73 = por %p71, %p72
    %p75 = scmp.ne.s32.totalorder %s58, %s74
    %p76 = scmp.eq.s32.totalorder %s15, 0
    %p77 = por %p75, %p76
    %s79 = sadd.s32 %s78, 1
    %p82 = scmp.eq.s32.totalorder %s9, 1
    %p83 = scmp.ne.s32.totalorder %s78, %s80
    %p84 = scmp.eq.s32.totalorder %s9, 0
    %p85 = por %p83, %p84
    %p86 = scmp.ne.s32.totalorder %s78, %s80
    %p87 = scmp.eq.s32.totalorder %s14, 1
    %p88 = por %p86, %p87
    %p89 = scmp.ne.s32.totalorder %s80, %s81
    %p90 = scmp.eq.s32.totalorder %s14, 0
    %p91 = por %p89, %p90
    %p92 = scmp.ne.s32.totalorder %s80, %s81
    %p93 = scmp.eq.s32.totalorder %s15, 1
    %p94 = por %p92, %p93
    %p96 = scmp.ne.s32.totalorder %s81, %s95
    %p97 = scmp.eq.s32.totalorder %s15, 0
    %p98 = por %p96, %p97
    %s99 = ssub.s32 %s16, %s28
    %s100 = ssub.s32 %s17, %s24
    %s101 = sor.u32 %s99, %s100
    %p102 = scmp.eq.s32.totalorder %s101, 0
    %s104 = sadd.s32 %s103, 1
    %s105 = scalar_select %p102, %s103, %s104
    %p108 = pneg %p102
    %p109 = scmp.eq.s32.totalorder %s9, 1
    %p110 = por %p108, %p109
    %p111 = scmp.ne.s32.totalorder %s103, %s106
    %p112 = scmp.eq.s32.totalorder %s9, 0
    %p113 = por %p111, %p112
    %p114 = scmp.ne.s32.totalorder %s103, %s106
    %p115 = scmp.eq.s32.totalorder %s14, 1
    %p116 = por %p114, %p115
    %p117 = scmp.ne.s32.totalorder %s106, %s107
    %p118 = scmp.eq.s32.totalorder %s14, 0
    %p119 = por %p117, %p118
    %p120 = scmp.ne.s32.totalorder %s106, %s107
    %p121 = scmp.eq.s32.totalorder %s15, 1
    %p122 = por %p120, %p121
    %p124 = scmp.ne.s32.totalorder %s107, %s123
    %p125 = scmp.eq.s32.totalorder %s15, 0
    %p126 = por %p124, %p125
    %p127 = scmp.le.s32.totalorder 1, %s9
    %p128 = scmp.lt.s32.totalorder %s9, 3
    %p129 = pnand %p127, %p128
    %p130 = pneg %p129
    // Predicated region
    $region9: #{resblk_forward.5} parent=5 // pred_check
      _
    $region10: #{resblk_forward.5} parent=5 // pred_check_branch
      %132 = sbr.rel (%p129) target = $region12
    $region11: #{resblk_forward.5} parent=5 // pred_region
      %s133 = ssub.s32 %s9, 1
      // Predicated region
      $region13: #{resblk_forward.5} parent=11 // pred_check
        %p134 = pneg %p42
      $region14: #{resblk_forward.5} parent=11 // pred_check_branch
        %136 = sbr.rel (%p134) target = $region16
      $region15: #{resblk_forward.5} parent=11 // pred_region
        _
      $region16: #{resblk_forward.5} parent=11 // pred_fallthru
        _
      // Predicated region
      $region17: #{resblk_forward.5} parent=11 // pred_check
        %p137 = pneg %p91
      $region18: #{resblk_forward.5} parent=11 // pred_check_branch
        %139 = sbr.rel (%p137) target = $region20
      $region19: #{resblk_forward.5} parent=11 // pred_region
        _
      $region20: #{resblk_forward.5} parent=11 // pred_fallthru
        _
    $region12: #{resblk_forward.5} parent=5 // pred_fallthru
      _
    %p140 = scmp.lt.s32.totalorder %s9, 2
    // Predicated region
    $region21: #{resblk_forward.5} parent=5 // pred_check
      %p141 = pneg %p140
    $region22: #{resblk_forward.5} parent=5 // pred_check_branch
      %143 = sbr.rel (%p141) target = $region24
    $region23: #{resblk_forward.5} parent=5 // pred_region
      // Predicated region
      $region25: #{resblk_forward.5} parent=23 // pred_check
        %p144 = pneg %p64
      $region26: #{resblk_forward.5} parent=23 // pred_check_branch
        %146 = sbr.rel (%p144) target = $region28
      $region27: #{resblk_forward.5} parent=23 // pred_region
        %s147 = smul.u32 2, %s17
        %p148 = scmp.lt.s32.totalorder %s16, 1
        %s149 = scalar_select %p148, %s16, 1
        %p150 = scmp.lt.s32.totalorder %s147, 1
        %s151 = scalar_select %p150, %s147, 1
        %s152 = smul.addr %s149, 2
        %s153 = sadd.s32 %s151, %s152
        %s154 = smul.addr %s153, 4
        %s155 = scalar_lea.vmem %s1, %s154
        %s156 = smul.u32 2, %s17
      $region28: #{resblk_forward.5} parent=23 // pred_fallthru
        _
    $region24: #{resblk_forward.5} parent=5 // pred_fallthru
      _
    %p157 = scmp.le.s32.totalorder 1, %s9
    %p158 = scmp.lt.s32.totalorder %s9, 3
    %p159 = pnand %p157, %p158
    %p160 = pneg %p159
    // Predicated region
    $region29: #{resblk_forward.5} parent=5 // pred_check
      _
    $region30: #{resblk_forward.5} parent=5 // pred_check_branch
      %162 = sbr.rel (%p159) target = $region32
    $region31: #{resblk_forward.5} parent=5 // pred_region
      %s163 = ssub.s32 %s9, 1
      %p164 = pneg %p42
      %p165 = pneg %p39
      %s166 = smul.u32 2, %s19
      %p167 = scmp.lt.s32.totalorder %s18, 1
      %s168 = scalar_select %p167, %s18, 1
      %p169 = scmp.lt.s32.totalorder %s166, 1
      %s170 = scalar_select %p169, %s166, 1
      %s171 = smul.addr %s168, 2
      %s172 = sadd.s32 %s170, %s171
      %s173 = smul.addr %s172, 4
      %s174 = scalar_lea.vmem %s1, %s173
      %p175 = pneg %p70
      %p176 = pneg %p67
      %p177 = pneg %p91
      %p178 = pneg %p88
      %p179 = pneg %p119
      %p180 = pneg %p116
      %s181 = smul.u32 2, %s19
      %p182 = scmp.lt.s32.totalorder %s18, 1
      %s183 = scalar_select %p182, %s18, 1
      %p184 = scmp.lt.s32.totalorder %s181, 1
      %s185 = scalar_select %p184, %s181, 1
      %s186 = smul.addr %s183, 2
      %s187 = sadd.s32 %s185, %s186
      %s188 = smul.addr %s187, 8
      %s189 = scalar_lea.vmem %s3, %s188
      %s190 = smul.u32 2, %s19
      %p191 = scmp.lt.s32.totalorder %s18, 1
      %s192 = scalar_select %p191, %s18, 1
      %p193 = scmp.lt.s32.totalorder %s190, 1
      %s194 = scalar_select %p193, %s190, 1
      %s195 = smul.addr %s192, 2
      %s196 = sadd.s32 %s194, %s195
      %s197 = smul.addr %s196, 4
      %s198 = scalar_lea.vmem %s1, %s197
      %s199 = smul.u32 2, %s19
      %s200 = smul.u32 2, %s19
      %p201 = scmp.lt.s32.totalorder %s18, 1
      %s202 = scalar_select %p201, %s18, 1
      %p203 = scmp.lt.s32.totalorder %s200, 1
      %s204 = scalar_select %p203, %s200, 1
      %s205 = smul.addr %s202, 2
      %s206 = sadd.s32 %s204, %s205
      %s207 = smul.addr %s206, 8
      %s208 = scalar_lea.vmem %s3, %s207
      %s209 = smul.u32 2, %s19
      %v210 = vld [vmem:[%s0] sm:$0xff]
      %v211 = vld [vmem:[%s198] sm:$0xff]
      %v212 = vld [vmem:[%s2] sm:$0xff]
      %214 = vset.pattern.permute.xlu0 0
      %215 = vperm.xlu0 %214, %v212
      %v216 = vpop.permute.xlu0 %215
      %v219 = vcombine.high %v211, %v211
      %vm220 = vcmask 31744
      %v222 = vsel %vm220, %v210, 0
      %vm224 = vcmask 1043456
      %v225 = vsel %vm224, %v211, 0
      %v227 = vsel %vm224, %v219, 0
      %229 = vmatprep.subr.mxu0 %v227
      %230 = vmatpush1.msra.mxu0 %v225
      %231 = vmatprep.subr.mxu0 0.0
      %232 = vmatpush1.msra.mxu0 0.0
      %233 = vmatprep.subr.mxu0 0.0
      %234 = vmatpush1.msra.mxu0 0.0
      %235 = vmatprep.subr.mxu0 0.0
      %236 = vmatpush1.msra.mxu0 0.0
      %237 = vmatprep.subr.mxu0 0.0
      %238 = vmatpush1.msra.mxu0 0.0
      %239 = vmatprep.subr.mxu0 0.0
      %240 = vmatpush1.msra.mxu0 0.0
      %241 = vmatprep.subr.mxu0 0.0
      %242 = vmatpush1.msra.mxu0 0.0
      %243 = vmatprep.subr.mxu0 0.0
      %244 = vmatpush1.msra.mxu0 0.0
      %245 = vmatprep.subr.mxu0 0.0
      %246 = vmatpush1.msra.mxu0 0.0
      %247 = vmatprep.subr.mxu0 0.0
      %248 = vmatpush1.msra.mxu0 0.0
      %249 = vmatprep.subr.mxu0 0.0
      %250 = vmatpush1.msra.mxu0 0.0
      %251 = vmatprep.subr.mxu0 0.0
      %252 = vmatpush1.msra.mxu0 0.0
      %253 = vmatprep.subr.mxu0 0.0
      %254 = vmatpush1.msra.mxu0 0.0
      %255 = vmatprep.subr.mxu0 0.0
      %256 = vmatpush1.msra.mxu0 0.0
      %257 = vmatprep.subr.mxu0 0.0
      %258 = vmatpush1.msra.mxu0 0.0
      %259 = vmatprep.subr.mxu0 0.0
      %260 = vmatpush1.msra.mxu0 0.0
      %261 = vmatprep.subr.mxu0 0.0
      %262 = vmatpush1.msra.mxu0 0.0
      %263 = vmatprep.subr.mxu0 0.0
      %264 = vmatpush1.msra.mxu0 0.0
      %265 = vmatprep.subr.mxu0 0.0
      %266 = vmatpush1.msra.mxu0 0.0
      %267 = vmatprep.subr.mxu0 0.0
      %268 = vmatpush1.msra.mxu0 0.0
      %269 = vmatprep.subr.mxu0 0.0
      %270 = vmatpush1.msra.mxu0 0.0
      %271 = vmatprep.subr.mxu0 0.0
      %272 = vmatpush1.msra.mxu0 0.0
      %273 = vmatprep.subr.mxu0 0.0
      %274 = vmatpush1.msra.mxu0 0.0
      %275 = vmatprep.subr.mxu0 0.0
      %276 = vmatpush1.msra.mxu0 0.0
      %277 = vmatprep.subr.mxu0 0.0
      %278 = vmatpush1.msra.mxu0 0.0
      %279 = vmatprep.subr.mxu0 0.0
      %280 = vmatpush1.msra.mxu0 0.0
      %281 = vmatprep.subr.mxu0 0.0
      %282 = vmatpush1.msra.mxu0 0.0
      %283 = vmatprep.subr.mxu0 0.0
      %284 = vmatpush1.msra.mxu0 0.0
      %285 = vmatprep.subr.mxu0 0.0
      %286 = vmatpush1.msra.mxu0 0.0
      %287 = vmatprep.subr.mxu0 0.0
      %288 = vmatpush1.msra.mxu0 0.0
      %289 = vmatprep.subr.mxu0 0.0
      %290 = vmatpush1.msra.mxu0 0.0
      %291 = vmatprep.subr.mxu0 0.0
      %292 = vmatpush1.msra.mxu0 0.0
      %293 = vmatprep.mubr.f32.mxu0 0.0
      %294 = vmatmul.mubr.f32.gmra.mrb[0].mxu0 %v222
      %v295 = vpop.f32.mrb[0].mxu0
      %v296 = vadd.f32 %v216, %v295
      %v297 = vpop.f32.mrb[0].mxu0
      %v298 = vadd.f32 %v216, %v297
      %299 = vdwg.mxu0
      %300 = vst [vmem:[%s208] sm:$0xff] %v296
      %301 = vst [vmem:[%s208 + $0x8] sm:$0xff] %v298
      %s302 = smul.u32 2, %s19
      %p303 = scmp.lt.s32.totalorder %s18, 1
      %s304 = scalar_select %p303, %s18, 1
      %p305 = scmp.lt.s32.totalorder %s302, 1
      %s306 = scalar_select %p305, %s302, 1
      %s307 = smul.addr %s304, 2
      %s308 = sadd.s32 %s306, %s307
      %s309 = smul.addr %s308, 8
      %s310 = scalar_lea.vmem %s3, %s309
      // Predicated region
      $region33: #{resblk_forward.5} parent=31 // pred_check
        %p311 = pneg %p116
      $region34: #{resblk_forward.5} parent=31 // pred_check_branch
        %313 = sbr.rel (%p311) target = $region36
      $region35: #{resblk_forward.5} parent=31 // pred_region
        %s314 = smul.u32 2, %s19
      $region36: #{resblk_forward.5} parent=31 // pred_fallthru
        _
    $region32: #{resblk_forward.5} parent=5 // pred_fallthru
      _
    %p315 = scmp.le.s32.totalorder 2, %s9
    // Predicated region
    $region37: #{resblk_forward.5} parent=5 // pred_check
      %p316 = pneg %p315
    $region38: #{resblk_forward.5} parent=5 // pred_check_branch
      %318 = sbr.rel (%p316) target = $region40
    $region39: #{resblk_forward.5} parent=5 // pred_region
      %s319 = ssub.s32 %s9, 2
      // Predicated region
      $region41: #{resblk_forward.5} parent=39 // pred_check
        %p320 = pneg %p122
      $region42: #{resblk_forward.5} parent=39 // pred_check_branch
        %322 = sbr.rel (%p320) target = $region44
      $region43: #{resblk_forward.5} parent=39 // pred_region
        %s323 = smul.u32 2, %s21
        %p324 = scmp.lt.s32.totalorder %s20, 1
        %s325 = scalar_select %p324, %s20, 1
        %p326 = scmp.lt.s32.totalorder %s323, 1
        %s327 = scalar_select %p326, %s323, 1
        %s328 = smul.addr %s325, 2
        %s329 = sadd.s32 %s327, %s328
        %s330 = smul.addr %s329, 8
        %s331 = scalar_lea.vmem %s3, %s330
      $region44: #{resblk_forward.5} parent=39 // pred_fallthru
        _
    $region40: #{resblk_forward.5} parent=5 // pred_fallthru
      _
  $region6: #{resblk_forward.5} parent=0 // loop_footer
    %s13 = sadd.s32 1, %s9
  $region7: #{resblk_forward.5} parent=0 // loop_footer_branch
    %8 = sbr.rel target = $region3
  $region8: #{resblk_forward.5} parent=0 // loop_exit
    _

// kernel: resblk_forward.9
$region0: #{resblk_forward.9}
  #allocation0 [shape = 'u32[]', space=smem, size = 0x4, offset = 0x4, fixed_abs, tag = 'smem constant byte address 0x4 - core index']
  #allocation1 [shape = 'u32[144,128]{1,0:T(1,128)}', space=vmem, size = 0x12000, scoped, tag = 'internal scratch']
  %s0 = inlined_call_operand.vmem [shape: f32[8,36], index: 0, kind: input, shape index: {}]
  %s1 = inlined_call_operand.vmem [shape: f32[2,36,64], index: 1, kind: input, shape index: {}]
  %s2 = inlined_call_operand.vmem [shape: f32[8,1], index: 2, kind: input, shape index: {}]
  %s3 = inlined_call_operand.vmem [shape: f32[2,8,64], index: 3, kind: input, shape index: {}]
  %s4 = inlined_call_operand.vmem [shape: f32[2,8,64], index: 4, kind: output, shape index: {}]
  %s5 = sld [smem:[#allocation0]]
  $region49: #{resblk_forward.9} parent=0
    _
  %s7 = ssub.s32 1, %s5
  %s8 = scalar_select 0, %s7, %s5
  loop: start=0, step=1, limit=4
  $region2: #{resblk_forward.9} parent=0 // loop_pre_header
    _
  $region3: #{resblk_forward.9} parent=0 // loop_header
    %s10 = sphi 0, %s14
    %p11 = scmp.ge.s32.totalorder %s10, 4
    %s17 = sphi 0, %s29
    %s18 = sphi 0, %s25
    %s19 = sphi 0, %s17
    %s20 = sphi 0, %s18
    %s21 = sphi 0, %s19
    %s22 = sphi 0, %s20
    %s30 = sphi 0, %s30
    %s32 = sphi 0, %s30
    %s33 = sphi 0, %s32
    %s47 = sphi 0, %s33
    %s55 = sphi 0, %s57
    %s58 = sphi 0, %s55
    %s59 = sphi 0, %s58
    %s75 = sphi 0, %s59
    %s79 = sphi 0, %s79
    %s81 = sphi 0, %s79
    %s82 = sphi 0, %s81
    %s96 = sphi 0, %s82
    %s104 = sphi 0, %s106
    %s107 = sphi 0, %s104
    %s108 = sphi 0, %s107
    %s124 = sphi 0, %s108
    %s132 = sphi 0, %s134
    %s135 = sphi 0, %s132
    %s136 = sphi 0, %s135
    %s152 = sphi 0, %s136
  $region4: #{resblk_forward.9} parent=0 // loop_header_branch
    %13 = sbr.rel (%p11) target = $region8
  $region5: #{resblk_forward.9} parent=0 // loop_body
    %s15 = ssub.s32 %s10, 1
    %s16 = ssub.s32 %s10, 2
    %s23 = sadd.s32 1, %s18
    %p24 = scmp.ge.s32.totalorder %s23, 1
    %s25 = scalar_select %p24, 0, %s23
    %s26 = sadd.s32 1, %s17
    %s27 = scalar_select %p24, %s26, %s17
    %p28 = scmp.ge.s32.totalorder %s27, 2
    %s29 = scalar_select %p28, 0, %s27
    %s31 = sadd.s32 %s30, 1
    %p34 = scmp.eq.s32.totalorder %s10, 1
    %p35 = scmp.ne.s32.totalorder %s30, %s32
    %p36 = scmp.eq.s32.totalorder %s10, 0
    %p37 = por %p35, %p36
    %p38 = scmp.ne.s32.totalorder %s30, %s32
    %p39 = scmp.eq.s32.totalorder %s15, 1
    %p40 = por %p38, %p39
    %p41 = scmp.ne.s32.totalorder %s32, %s33
    %p42 = scmp.eq.s32.totalorder %s15, 0
    %p43 = por %p41, %p42
    %p44 = scmp.ne.s32.totalorder %s32, %s33
    %p45 = scmp.eq.s32.totalorder %s16, 1
    %p46 = por %p44, %p45
    %p48 = scmp.ne.s32.totalorder %s33, %s47
    %p49 = scmp.eq.s32.totalorder %s16, 0
    %p50 = por %p48, %p49
    %s51 = ssub.s32 %s17, %s29
    %s52 = ssub.s32 %s18, %s25
    %s53 = sor.u32 %s51, %s52
    %p54 = scmp.eq.s32.totalorder %s53, 0
    %s56 = sadd.s32 %s55, 1
    %s57 = scalar_select %p54, %s55, %s56
    %p60 = pneg %p54
    %p61 = scmp.eq.s32.totalorder %s10, 1
    %p62 = por %p60, %p61
    %p63 = scmp.ne.s32.totalorder %s55, %s58
    %p64 = scmp.eq.s32.totalorder %s10, 0
    %p65 = por %p63, %p64
    %p66 = scmp.ne.s32.totalorder %s55, %s58
    %p67 = scmp.eq.s32.totalorder %s15, 1
    %p68 = por %p66, %p67
    %p69 = scmp.ne.s32.totalorder %s58, %s59
    %p70 = scmp.eq.s32.totalorder %s15, 0
    %p71 = por %p69, %p70
    %p72 = scmp.ne.s32.totalorder %s58, %s59
    %p73 = scmp.eq.s32.totalorder %s16, 1
    %p74 = por %p72, %p73
    %p76 = scmp.ne.s32.totalorder %s59, %s75
    %p77 = scmp.eq.s32.totalorder %s16, 0
    %p78 = por %p76, %p77
    %s80 = sadd.s32 %s79, 1
    %p83 = scmp.eq.s32.totalorder %s10, 1
    %p84 = scmp.ne.s32.totalorder %s79, %s81
    %p85 = scmp.eq.s32.totalorder %s10, 0
    %p86 = por %p84, %p85
    %p87 = scmp.ne.s32.totalorder %s79, %s81
    %p88 = scmp.eq.s32.totalorder %s15, 1
    %p89 = por %p87, %p88
    %p90 = scmp.ne.s32.totalorder %s81, %s82
    %p91 = scmp.eq.s32.totalorder %s15, 0
    %p92 = por %p90, %p91
    %p93 = scmp.ne.s32.totalorder %s81, %s82
    %p94 = scmp.eq.s32.totalorder %s16, 1
    %p95 = por %p93, %p94
    %p97 = scmp.ne.s32.totalorder %s82, %s96
    %p98 = scmp.eq.s32.totalorder %s16, 0
    %p99 = por %p97, %p98
    %s100 = ssub.s32 %s17, %s29
    %s101 = ssub.s32 %s18, %s25
    %s102 = sor.u32 %s100, %s101
    %p103 = scmp.eq.s32.totalorder %s102, 0
    %s105 = sadd.s32 %s104, 1
    %s106 = scalar_select %p103, %s104, %s105
    %p109 = pneg %p103
    %p110 = scmp.eq.s32.totalorder %s10, 1
    %p111 = por %p109, %p110
    %p112 = scmp.ne.s32.totalorder %s104, %s107
    %p113 = scmp.eq.s32.totalorder %s10, 0
    %p114 = por %p112, %p113
    %p115 = scmp.ne.s32.totalorder %s104, %s107
    %p116 = scmp.eq.s32.totalorder %s15, 1
    %p117 = por %p115, %p116
    %p118 = scmp.ne.s32.totalorder %s107, %s108
    %p119 = scmp.eq.s32.totalorder %s15, 0
    %p120 = por %p118, %p119
    %p121 = scmp.ne.s32.totalorder %s107, %s108
    %p122 = scmp.eq.s32.totalorder %s16, 1
    %p123 = por %p121, %p122
    %p125 = scmp.ne.s32.totalorder %s108, %s124
    %p126 = scmp.eq.s32.totalorder %s16, 0
    %p127 = por %p125, %p126
    %s128 = ssub.s32 %s17, %s29
    %s129 = ssub.s32 %s18, %s25
    %s130 = sor.u32 %s128, %s129
    %p131 = scmp.eq.s32.totalorder %s130, 0
    %s133 = sadd.s32 %s132, 1
    %s134 = scalar_select %p131, %s132, %s133
    %p137 = pneg %p131
    %p138 = scmp.eq.s32.totalorder %s10, 1
    %p139 = por %p137, %p138
    %p140 = scmp.ne.s32.totalorder %s132, %s135
    %p141 = scmp.eq.s32.totalorder %s10, 0
    %p142 = por %p140, %p141
    %p143 = scmp.ne.s32.totalorder %s132, %s135
    %p144 = scmp.eq.s32.totalorder %s15, 1
    %p145 = por %p143, %p144
    %p146 = scmp.ne.s32.totalorder %s135, %s136
    %p147 = scmp.eq.s32.totalorder %s15, 0
    %p148 = por %p146, %p147
    %p149 = scmp.ne.s32.totalorder %s135, %s136
    %p150 = scmp.eq.s32.totalorder %s16, 1
    %p151 = por %p149, %p150
    %p153 = scmp.ne.s32.totalorder %s136, %s152
    %p154 = scmp.eq.s32.totalorder %s16, 0
    %p155 = por %p153, %p154
    %p156 = scmp.le.s32.totalorder 1, %s10
    %p157 = scmp.lt.s32.totalorder %s10, 3
    %p158 = pnand %p156, %p157
    %p159 = pneg %p158
    // Predicated region
    $region9: #{resblk_forward.9} parent=5 // pred_check
      _
    $region10: #{resblk_forward.9} parent=5 // pred_check_branch
      %161 = sbr.rel (%p158) target = $region12
    $region11: #{resblk_forward.9} parent=5 // pred_region
      %s162 = ssub.s32 %s10, 1
      // Predicated region
      $region13: #{resblk_forward.9} parent=11 // pred_check
        %p163 = pneg %p43
      $region14: #{resblk_forward.9} parent=11 // pred_check_branch
        %165 = sbr.rel (%p163) target = $region16
      $region15: #{resblk_forward.9} parent=11 // pred_region
        _
      $region16: #{resblk_forward.9} parent=11 // pred_fallthru
        _
      // Predicated region
      $region17: #{resblk_forward.9} parent=11 // pred_check
        %p166 = pneg %p92
      $region18: #{resblk_forward.9} parent=11 // pred_check_branch
        %168 = sbr.rel (%p166) target = $region20
      $region19: #{resblk_forward.9} parent=11 // pred_region
        _
      $region20: #{resblk_forward.9} parent=11 // pred_fallthru
        _
    $region12: #{resblk_forward.9} parent=5 // pred_fallthru
      _
    %p169 = scmp.lt.s32.totalorder %s10, 2
    // Predicated region
    $region21: #{resblk_forward.9} parent=5 // pred_check
      %p170 = pneg %p169
    $region22: #{resblk_forward.9} parent=5 // pred_check_branch
      %172 = sbr.rel (%p170) target = $region24
    $region23: #{resblk_forward.9} parent=5 // pred_region
      // Predicated region
      $region25: #{resblk_forward.9} parent=23 // pred_check
        %p173 = pneg %p65
      $region26: #{resblk_forward.9} parent=23 // pred_check_branch
        %175 = sbr.rel (%p173) target = $region28
      $region27: #{resblk_forward.9} parent=23 // pred_region
        %p176 = scmp.lt.s32.totalorder %s17, 1
        %s177 = scalar_select %p176, %s17, 1
        %p178 = scmp.lt.s32.totalorder %s18, 0
        %s179 = scalar_select %p178, %s18, 0
        %s180 = smul.addr %s177, 5
        %s181 = sadd.s32 %s179, %s180
        %s182 = smul.addr %s181, 8
        %s183 = scalar_lea.vmem %s1, %s182
      $region28: #{resblk_forward.9} parent=23 // pred_fallthru
        _
      // Predicated region
      $region29: #{resblk_forward.9} parent=23 // pred_check
        %p184 = pneg %p114
      $region30: #{resblk_forward.9} parent=23 // pred_check_branch
        %186 = sbr.rel (%p184) target = $region32
      $region31: #{resblk_forward.9} parent=23 // pred_region
        %p187 = scmp.lt.s32.totalorder %s17, 1
        %s188 = scalar_select %p187, %s17, 1
        %p189 = scmp.lt.s32.totalorder %s18, 0
        %s190 = scalar_select %p189, %s18, 0
        %s191 = sadd.s32 %s190, %s188
        %s192 = smul.addr %s191, 8
        %s193 = scalar_lea.vmem %s3, %s192
      $region32: #{resblk_forward.9} parent=23 // pred_fallthru
        _
    $region24: #{resblk_forward.9} parent=5 // pred_fallthru
      _
    %p194 = scmp.le.s32.totalorder 1, %s10
    %p195 = scmp.lt.s32.totalorder %s10, 3
    %p196 = pnand %p194, %p195
    %p197 = pneg %p196
    // Predicated region
    $region33: #{resblk_forward.9} parent=5 // pred_check
      _
    $region34: #{resblk_forward.9} parent=5 // pred_check_branch
      %199 = sbr.rel (%p196) target = $region36
    $region35: #{resblk_forward.9} parent=5 // pred_region
      %s200 = ssub.s32 %s10, 1
      %p201 = pneg %p43
      %p202 = pneg %p40
      %p203 = scmp.lt.s32.totalorder %s19, 1
      %s204 = scalar_select %p203, %s19, 1
      %p205 = scmp.lt.s32.totalorder %s20, 0
      %s206 = scalar_select %p205, %s20, 0
      %s207 = smul.addr %s204, 5
      %s208 = sadd.s32 %s206, %s207
      %s209 = smul.addr %s208, 8
      %s210 = scalar_lea.vmem %s1, %s209
      %p211 = pneg %p71
      %p212 = pneg %p68
      %p213 = pneg %p92
      %p214 = pneg %p89
      %p215 = scmp.lt.s32.totalorder %s19, 1
      %s216 = scalar_select %p215, %s19, 1
      %p217 = scmp.lt.s32.totalorder %s20, 0
      %s218 = scalar_select %p217, %s20, 0
      %s219 = sadd.s32 %s218, %s216
      %s220 = smul.addr %s219, 8
      %s221 = scalar_lea.vmem %s3, %s220
      %p222 = pneg %p120
      %p223 = pneg %p117
      %p224 = pneg %p148
      %p225 = pneg %p145
      %p226 = scmp.lt.s32.totalorder %s19, 1
      %s227 = scalar_select %p226, %s19, 1
      %p228 = scmp.lt.s32.totalorder %s20, 0
      %s229 = scalar_select %p228, %s20, 0
      %s230 = sadd.s32 %s229, %s227
      %s231 = smul.addr %s230, 8
      %s232 = scalar_lea.vmem %s4, %s231
      %p233 = scmp.lt.s32.totalorder %s19, 1
      %s234 = scalar_select %p233, %s19, 1
      %p235 = scmp.lt.s32.totalorder %s20, 0
      %s236 = scalar_select %p235, %s20, 0
      %s237 = smul.addr %s234, 5
      %s238 = sadd.s32 %s236, %s237
      %s239 = smul.addr %s238, 8
      %s240 = scalar_lea.vmem %s1, %s239
      %p241 = scmp.lt.s32.totalorder %s19, 1
      %s242 = scalar_select %p241, %s19, 1
      %p243 = scmp.lt.s32.totalorder %s20, 0
      %s244 = scalar_select %p243, %s20, 0
      %s245 = sadd.s32 %s244, %s242
      %s246 = smul.addr %s245, 8
      %s247 = scalar_lea.vmem %s3, %s246
      %p248 = scmp.lt.s32.totalorder %s19, 1
      %s249 = scalar_select %p248, %s19, 1
      %p250 = scmp.lt.s32.totalorder %s20, 0
      %s251 = scalar_select %p250, %s20, 0
      %s252 = sadd.s32 %s251, %s249
      %s253 = smul.addr %s252, 8
      %s254 = scalar_lea.vmem %s4, %s253
      %v255 = vld [vmem:[%s0] sm:$0xff]
      %v256 = vld [vmem:[%s240] sm:$0xff]
      %v257 = vld [vmem:[%s240 + $0x8] sm:$0xff]
      %v258 = vld [vmem:[%s240 + $0x10] sm:$0xff]
      %v259 = vld [vmem:[%s240 + $0x18] sm:$0xff]
      %v260 = vld [vmem:[%s240 + $0x20] sm:$0xf]
      %v261 = vld [vmem:[%s2] sm:$0xff]
      %263 = vset.pattern.permute.xlu0 0
      %264 = vperm.xlu0 %263, %v261
      %v265 = vpop.permute.xlu0 %264
      %vm267 = vcmask 293888
      %v269 = vsel %vm267, %v255, 0
      %vm271 = vcmask 1043456
      %v273 = vsel %vm271, %v260, 0
      %275 = vmatprep.subr.mxu0 0.0
      %276 = vmatpush1.msra.mxu0 %v256
      %277 = vmatprep.subr.mxu0 0.0
      %278 = vmatpush1.msra.mxu0 %v257
      %279 = vmatprep.subr.mxu0 0.0
      %280 = vmatpush1.msra.mxu0 %v258
      %281 = vmatprep.subr.mxu0 0.0
      %282 = vmatpush1.msra.mxu0 %v259
      %283 = vmatprep.subr.mxu0 0.0
      %284 = vmatpush1.msra.mxu0 %v273
      %285 = vmatprep.subr.mxu0 0.0
      %286 = vmatpush1.msra.mxu0 0.0
      %287 = vmatprep.subr.mxu0 0.0
      %288 = vmatpush1.msra.mxu0 0.0
      %289 = vmatprep.subr.mxu0 0.0
      %290 = vmatpush1.msra.mxu0 0.0
      %291 = vmatprep.subr.mxu0 0.0
      %292 = vmatpush1.msra.mxu0 0.0
      %293 = vmatprep.subr.mxu0 0.0
      %294 = vmatpush1.msra.mxu0 0.0
      %295 = vmatprep.subr.mxu0 0.0
      %296 = vmatpush1.msra.mxu0 0.0
      %297 = vmatprep.subr.mxu0 0.0
      %298 = vmatpush1.msra.mxu0 0.0
      %299 = vmatprep.subr.mxu0 0.0
      %300 = vmatpush1.msra.mxu0 0.0
      %301 = vmatprep.subr.mxu0 0.0
      %302 = vmatpush1.msra.mxu0 0.0
      %303 = vmatprep.subr.mxu0 0.0
      %304 = vmatpush1.msra.mxu0 0.0
      %305 = vmatprep.subr.mxu0 0.0
      %306 = vmatpush1.msra.mxu0 0.0
      %307 = vmatprep.subr.mxu0 0.0
      %308 = vmatpush1.msra.mxu0 0.0
      %309 = vmatprep.subr.mxu0 0.0
      %310 = vmatpush1.msra.mxu0 0.0
      %311 = vmatprep.subr.mxu0 0.0
      %312 = vmatpush1.msra.mxu0 0.0
      %313 = vmatprep.subr.mxu0 0.0
      %314 = vmatpush1.msra.mxu0 0.0
      %315 = vmatprep.subr.mxu0 0.0
      %316 = vmatpush1.msra.mxu0 0.0
      %317 = vmatprep.subr.mxu0 0.0
      %318 = vmatpush1.msra.mxu0 0.0
      %319 = vmatprep.subr.mxu0 0.0
      %320 = vmatpush1.msra.mxu0 0.0
      %321 = vmatprep.subr.mxu0 0.0
      %322 = vmatpush1.msra.mxu0 0.0
      %323 = vmatprep.subr.mxu0 0.0
      %324 = vmatpush1.msra.mxu0 0.0
      %325 = vmatprep.subr.mxu0 0.0
      %326 = vmatpush1.msra.mxu0 0.0
      %327 = vmatprep.subr.mxu0 0.0
      %328 = vmatpush1.msra.mxu0 0.0
      %329 = vmatprep.subr.mxu0 0.0
      %330 = vmatpush1.msra.mxu0 0.0
      %331 = vmatprep.subr.mxu0 0.0
      %332 = vmatpush1.msra.mxu0 0.0
      %333 = vmatprep.subr.mxu0 0.0
      %334 = vmatpush1.msra.mxu0 0.0
      %335 = vmatprep.subr.mxu0 0.0
      %336 = vmatpush1.msra.mxu0 0.0
      %337 = vmatprep.subr.mxu0 0.0
      %338 = vmatpush1.msra.mxu0 0.0
      %339 = vmatprep.mubr.f32.mxu0 0.0
      %340 = vmatmul.mubr.f32.gmra.mrb[0].mxu0 %v269
      %v341 = vpop.f32.mrb[0].mxu0
      %v342 = vadd.f32 %v265, %v341
      %v343 = vpop.f32.mrb[0].mxu0
      %344 = vdwg.mxu0
      %v345 = vld [vmem:[%s247] sm:$0xff]
      %v346 = vadd.f32 %v342, %v345
      %v347 = vmul.f32 %v346, 0.70710677
      %vm348 = vcmask 523264
      %349 = vst.msk [vmem:[%s254] sm:$0xff] %vm348, %v347
      %p350 = scmp.lt.s32.totalorder %s19, 1
      %s351 = scalar_select %p350, %s19, 1
      %p352 = scmp.lt.s32.totalorder %s20, 0
      %s353 = scalar_select %p352, %s20, 0
      %s354 = sadd.s32 %s353, %s351
      %s355 = smul.addr %s354, 8
      %s356 = scalar_lea.vmem %s4, %s355
      // Predicated region
      $region37: #{resblk_forward.9} parent=35 // pred_check
        %p357 = pneg %p145
      $region38: #{resblk_forward.9} parent=35 // pred_check_branch
        %359 = sbr.rel (%p357) target = $region40
      $region39: #{resblk_forward.9} parent=35 // pred_region
        _
      $region40: #{resblk_forward.9} parent=35 // pred_fallthru
        _
    $region36: #{resblk_forward.9} parent=5 // pred_fallthru
      _
    %p360 = scmp.le.s32.totalorder 2, %s10
    // Predicated region
    $region41: #{resblk_forward.9} parent=5 // pred_check
      %p361 = pneg %p360
    $region42: #{resblk_forward.9} parent=5 // pred_check_branch
      %363 = sbr.rel (%p361) target = $region44
    $region43: #{resblk_forward.9} parent=5 // pred_region
      %s364 = ssub.s32 %s10, 2
      // Predicated region
      $region45: #{resblk_forward.9} parent=43 // pred_check
        %p365 = pneg %p151
      $region46: #{resblk_forward.9} parent=43 // pred_check_branch
        %367 = sbr.rel (%p365) target = $region48
      $region47: #{resblk_forward.9} parent=43 // pred_region
        %p368 = scmp.lt.s32.totalorder %s21, 1
        %s369 = scalar_select %p368, %s21, 1
        %p370 = scmp.lt.s32.totalorder %s22, 0
        %s371 = scalar_select %p370, %s22, 0
        %s372 = sadd.s32 %s371, %s369
        %s373 = smul.addr %s372, 8
        %s374 = scalar_lea.vmem %s4, %s373
      $region48: #{resblk_forward.9} parent=43 // pred_fallthru
        _
    $region44: #{resblk_forward.9} parent=5 // pred_fallthru
      _
  $region6: #{resblk_forward.9} parent=0 // loop_footer
    %s14 = sadd.s32 1, %s10
  $region7: #{resblk_forward.9} parent=0 // loop_footer_branch
    %9 = sbr.rel target = $region3
  $region8: #{resblk_forward.9} parent=0 // loop_exit
    _

</llo_original>
